<compile_context>
chip_gen: v6e
topology: v6e:2x2x1
jax: 0.10.0
libtpu: 0.0.40
codegen_flags: <defaults>
</compile_context>

<pallas_src>
import functools
import math

import jax
import jax.numpy as jnp
from jax import lax
from jax.experimental import pallas as pl
from jax.experimental.pallas import tpu as pltpu


def film_atten_kernel(x_ref, mm_ref, mb_ref,
                      wq_ref, wk_ref, wv_ref,
                      bq_ref, bk_ref, bv_ref,
                      pab_ref, pqb_ref, posq_ref, posk_ref,
                      o_ref,
                      logits_acc, wts_ref, *v_scr_tuple,
                      head_size, inv_scale, use_bf16_mxu, stash_v):
    p = pl.program_id(1)          # 0 = logits/preact pass, 1 = attention-output pass
    t = pl.program_id(2)          # HW tile index
    n_t = pl.num_programs(2)

    mxu_dt = jnp.bfloat16 if use_bf16_mxu else jnp.float32
    C = logits_acc.shape[0]
    v_scr = v_scr_tuple[0] if stash_v else None

    def preact_xq():
        x = x_ref[...]                                     # (C, tile_hw) f32
        x_pre = jax.nn.silu(x + pab_ref[...])              # elementwise kept in f32
        return x_pre, (x_pre + pqb_ref[...]).astype(mxu_dt)

    def proj(w_ref, b_ref, xq):
        return jnp.dot(w_ref[...].astype(mxu_dt), xq,
                       preferred_element_type=jnp.float32) + b_ref[...]

    @pl.when(p == 0)
    def _logits_pass():
        @pl.when(t == 0)
        def _init():
            logits_acc[...] = jnp.zeros(logits_acc.shape, logits_acc.dtype)

        x_preact, xq = preact_xq()

        q = proj(wq_ref, bq_ref, xq) + posq_ref[...]
        q = q * mm_ref[...] + mb_ref[...]                  # FiLM modulation
        k = proj(wk_ref, bk_ref, xq) + posk_ref[...]

        # logits[i, j] += sum_s q[i, s] * k[j, s]   (contract over this HW tile)
        logits_acc[...] += lax.dot_general(
            q.astype(mxu_dt), k.astype(mxu_dt),
            (((1,), (1,)), ((), ())),
            preferred_element_type=jnp.float32)

        if stash_v:
            # Keep v resident in VMEM so pass 1 never re-reads x from HBM.
            v_scr[t] = proj(wv_ref, bv_ref, xq)

        # first half of the dense-block concat: the pre-activation itself
        o_ref[...] = x_preact.astype(o_ref.dtype)

        @pl.when(t == n_t - 1)
        def _finalize_softmax():
            l = logits_acc[...] * inv_scale
            if head_size < C:                              # per-head block-diag mask
                row_h = lax.broadcasted_iota(jnp.int32, (C, C), 0) // head_size
                col_h = lax.broadcasted_iota(jnp.int32, (C, C), 1) // head_size
                in_head = row_h == col_h
                l = jnp.where(in_head, l, -jnp.inf)
            m = jnp.max(l, axis=-1, keepdims=True)
            e = jnp.exp(l - m)
            if head_size < C:
                e = jnp.where(in_head, e, 0.0)
            s = jnp.sum(e, axis=-1, keepdims=True)
            if use_bf16_mxu:
                inv_s = pl.reciprocal(s, approx=True)      # EUP slot, VALU-free
            else:
                inv_s = 1.0 / s                            # exact path for f32 checks
            wts_ref[...] = e * inv_s

    @pl.when(p == 1)
    def _output_pass():
        if stash_v:
            v = v_scr[t]
        else:
            _, xq = preact_xq()
            v = proj(wv_ref, bv_ref, xq)
        attn = jnp.dot(wts_ref[...].astype(mxu_dt), v.astype(mxu_dt),
                       preferred_element_type=jnp.float32)
        o_ref[...] = attn.astype(o_ref.dtype)


def _pick_tile_hw(hw, max_tile=2048):
    """Largest HW tile dividing HW that is a multiple of 128 and <= max_tile."""
    if hw <= max_tile:
        return hw
    t = (max_tile // 128) * 128
    while t >= 128:
        if hw % t == 0:
            return t
        t -= 128
    return hw


def film_atten_pallas(x_nchw, mod_multiplier, mod_bias, params, *, n_heads,
                      tile_hw=None, use_bf16_mxu=False, stash_v=None,
                      stash_budget_bytes=8 * 1024 * 1024):
    B, C, H, W = x_nchw.shape
    HW = H * W
    assert C % n_heads == 0, "feat_size must be divisible by n_heads"
    head_size = C // n_heads
    inv_scale = 1.0 / (head_size ** 0.5)

    if tile_hw is None:
        tile_hw = _pick_tile_hw(HW)
    assert HW % tile_hw == 0, (HW, tile_hw)
    assert tile_hw == HW or tile_hw % 128 == 0, tile_hw
    n_t = HW // tile_hw
    last_t = n_t - 1
    out_dtype = x_nchw.dtype

    if stash_v is None:
        stash_v = (C * HW * 4) <= stash_budget_bytes

    # NCHW -> (B, C, HW): pure reshape, no HBM transpose pass.
    x_flat = x_nchw.reshape(B, C, HW)

    # Split the 1x1-conv weight/bias into q/k/v pieces -> three aligned (C,C)
    # matmuls, no slicing of a (3C)-wide qkv at unaligned channel offsets.
    w = params["w_qkv"].reshape(3 * C, C)
    b = params["b_qkv"].reshape(3 * C)
    wq, wk, wv = w[0:C], w[C:2 * C], w[2 * C:3 * C]
    bq = b[0:C].reshape(C, 1)
    bk = b[C:2 * C].reshape(C, 1)
    bv = b[2 * C:3 * C].reshape(C, 1)

    # Positional embeddings in channel-major layout (pure reshape).
    pos_q = (params["pos_q_h"] + params["pos_q_w"]).reshape(C, HW)
    pos_k = (params["pos_k_h"] + params["pos_k_w"]).reshape(C, HW)

    pab = params["pre_act_bias"].reshape(C, 1)
    pqb = params["pre_qkv_bias"].reshape(C, 1)
    mm = mod_multiplier.reshape(B, C, 1)
    mb = mod_bias.reshape(B, C, 1)

    kernel = functools.partial(
        film_atten_kernel,
        head_size=head_size, inv_scale=inv_scale,
        use_bf16_mxu=use_bf16_mxu, stash_v=stash_v)

    def x_map(bb, pp, tt):
        if stash_v:
            # Pass 1 revisits the last pass-0 block -> its DMA is elided and x
            # is only streamed from HBM once per batch element.
            return (bb, 0, tt * (1 - pp) + last_t * pp)
        return (bb, 0, tt)

    def pos_map(bb, pp, tt):
        # pos embeddings are only needed in pass 0; revisit in pass 1.
        return (0, tt * (1 - pp) + last_t * pp)

    def const_spec(shape):
        return pl.BlockSpec(shape, lambda bb, pp, tt: (0,) * len(shape))

    in_specs = [
        pl.BlockSpec((None, C, tile_hw), x_map),                        # x
        pl.BlockSpec((None, C, 1), lambda bb, pp, tt: (bb, 0, 0)),      # mod mult
        pl.BlockSpec((None, C, 1), lambda bb, pp, tt: (bb, 0, 0)),      # mod bias
        const_spec((C, C)), const_spec((C, C)), const_spec((C, C)),     # Wq Wk Wv
        const_spec((C, 1)), const_spec((C, 1)), const_spec((C, 1)),     # bq bk bv
        const_spec((C, 1)), const_spec((C, 1)),                         # pre_act / pre_qkv bias
        pl.BlockSpec((C, tile_hw), pos_map),                            # pos_q
        pl.BlockSpec((C, tile_hw), pos_map),                            # pos_k
    ]
    out_specs = pl.BlockSpec((None, None, C, tile_hw),
                             lambda bb, pp, tt: (bb, pp, 0, tt))

    scratch_shapes = [pltpu.VMEM((C, C), jnp.float32),    # logits accumulator
                      pltpu.VMEM((C, C), jnp.float32)]    # softmax weights
    if stash_v:
        scratch_shapes.append(pltpu.VMEM((n_t, C, tile_hw), jnp.float32))

    # VMEM budget: double-buffered streaming tiles + resident params + scratch
    # (+ headroom), clamped to what all chips (incl. v7x, 64 MiB/TC) can hold.
    f32 = 4
    out_isz = jnp.dtype(out_dtype).itemsize
    vmem_est = (3 * C * tile_hw * f32 * 2                 # x, pos_q, pos_k tiles x2 bufs
                + C * tile_hw * out_isz * 2               # output tile x2 bufs
                + (3 * C * C + 9 * C) * f32 * 2           # weights / biases x2 bufs
                + 2 * C * C * f32                         # logits + softmax scratch
                + (C * HW * f32 if stash_v else 0)        # v stash
                + 8 * C * tile_hw * f32)                  # live intermediates headroom
    vmem_limit = int(min(max(2 * vmem_est, 32 * 1024 * 1024), 64 * 1024 * 1024))

    x_reads = 1 if stash_v else 2
    flops = 2 * B * HW * C * C * 5 + 14 * B * HW * C
    transcendentals = B * C * HW * x_reads + B * C * C
    bytes_accessed = ((x_reads * B * C * HW + 2 * C * HW + 2 * B * C
                       + 3 * C * C + 9 * C) * f32
                      + 2 * B * C * HW * out_isz)

    out = pl.pallas_call(
        kernel,
        out_shape=jax.ShapeDtypeStruct((B, 2, C, HW), out_dtype),
        grid_spec=pltpu.PrefetchScalarGridSpec(
            num_scalar_prefetch=0,
            grid=(B, 2, n_t),
            in_specs=in_specs,
            out_specs=out_specs,
            scratch_shapes=scratch_shapes,
        ),
        compiler_params=pltpu.CompilerParams(
            dimension_semantics=("parallel", "arbitrary", "arbitrary"),
            vmem_limit_bytes=vmem_limit),
        cost_estimate=pl.CostEstimate(flops=int(flops),
                                      transcendentals=int(transcendentals),
                                      bytes_accessed=int(bytes_accessed)),
    )(x_flat, mm, mb, wq, wk, wv, bq, bk, bv, pab, pqb, pos_q, pos_k)

    # (B, 2, C, HW) -> (B, 2C, H, W): pure reshape; pass-major order == concat order.
    return out.reshape(B, 2 * C, H, W)


def film_atten_reference(x_nchw, mod_multiplier, mod_bias, params, *, n_heads):
    """Pure-JAX transcription of the PyTorch forward (NCHW), for validation."""
    B, C, H, W = x_nchw.shape
    head_size = C // n_heads
    dot_scale = head_size ** 0.5
    hi = jax.lax.Precision.HIGHEST

    x_preact = jax.nn.silu(x_nchw + params["pre_act_bias"])
    xq = x_preact + params["pre_qkv_bias"]
    qkv = jnp.einsum("bchw,oc->bohw", xq, params["w_qkv"], precision=hi) \
        + params["b_qkv"][None, :, None, None]
    q, k, v = jnp.split(qkv, 3, axis=1)
    q = q + params["pos_q_h"] + params["pos_q_w"]
    k = k + params["pos_k_h"] + params["pos_k_w"]
    q = q * mod_multiplier[..., None, None] + mod_bias[..., None, None]
    q = q.reshape(B, n_heads, head_size, H * W)
    k = k.reshape(B, n_heads, head_size, H * W)
    v = v.reshape(B, n_heads, head_size, H * W)
    logits = jnp.einsum("bnis,bnjs->bnij", q, k, precision=hi) / dot_scale
    wts = jax.nn.softmax(logits, axis=-1)
    v = jnp.einsum("bnij,bnjs->bnis", wts, v, precision=hi).reshape(B, C, H, W)
    return jnp.concatenate([x_preact, v], axis=1)


if __name__ == "__main__":
    B, C, H, W = 2, 4, 16, 16

    key = jax.random.PRNGKey(0)
    keys = jax.random.split(key, 12)

    x = jax.random.normal(keys[0], (B, C, H, W), jnp.float32)
    mod_multiplier = jax.random.normal(keys[1], (B, C), jnp.float32)
    mod_bias = jax.random.normal(keys[2], (B, C), jnp.float32)

    init_std = 1.0 / math.sqrt(C)
    params = {
        "w_qkv": jax.random.normal(keys[3], (3 * C, C), jnp.float32) * init_std,
        "b_qkv": 0.1 * jax.random.normal(keys[10], (3 * C,), jnp.float32),
        "pos_q_h": 0.1 * jax.random.normal(keys[4], (1, C, H, 1), jnp.float32),
        "pos_q_w": 0.1 * jax.random.normal(keys[5], (1, C, 1, W), jnp.float32),
        "pos_k_h": 0.1 * jax.random.normal(keys[6], (1, C, H, 1), jnp.float32),
        "pos_k_w": 0.1 * jax.random.normal(keys[7], (1, C, 1, W), jnp.float32),
        "pre_act_bias": 0.1 * jax.random.normal(keys[8], (1, C, 1, 1), jnp.float32),
        "pre_qkv_bias": 0.1 * jax.random.normal(keys[9], (1, C, 1, 1), jnp.float32),
    }

    configs = [
        # (n_heads, use_bf16_mxu, tile_hw, stash_v, rtol, atol)
        (1, False, 128, None, 2e-2, 5e-2),     # f32 MXU, multi-tile, v-stash path
        (2, False, None, None, 2e-2, 5e-2),    # f32 MXU, single full-HW tile, per-head mask
        (2, False, 128, False, 2e-2, 5e-2),    # f32 MXU, recompute-v fallback path
        (1, True, 128, None, 2e-1, 2e-1),      # bf16 MXU operands (throughput path)
    ]
    for n_heads, use_bf16, tile_hw, stash_v, rtol, atol in configs:
        out = film_atten_pallas(x, mod_multiplier, mod_bias, params,
                                n_heads=n_heads, tile_hw=tile_hw,
                                use_bf16_mxu=use_bf16, stash_v=stash_v)
        out = jax.block_until_ready(out)
        ref = film_atten_reference(x, mod_multiplier, mod_bias, params,
                                   n_heads=n_heads)
        assert out.shape == (B, 2 * C, H, W), out.shape
        max_err = float(jnp.max(jnp.abs(out - ref)))
        assert jnp.allclose(out, ref, rtol=rtol, atol=atol), \
            ("mismatch", n_heads, use_bf16, stash_v, max_err)

    print("KERNEL_OK")
</pallas_src>

<mosaic_0001>
module attributes {stable_mosaic.version = 11 : i64} {
  func.func @film_atten_kernel(%arg0: i32, %arg1: i32, %arg2: i32, %arg3: memref<1x4x128xf32, #tpu.memory_space<vmem>>, %arg4: memref<1x4x1xf32, #tpu.memory_space<vmem>>, %arg5: memref<1x4x1xf32, #tpu.memory_space<vmem>>, %arg6: memref<4x4xf32, #tpu.memory_space<vmem>>, %arg7: memref<4x4xf32, #tpu.memory_space<vmem>>, %arg8: memref<4x4xf32, #tpu.memory_space<vmem>>, %arg9: memref<4x1xf32, #tpu.memory_space<vmem>>, %arg10: memref<4x1xf32, #tpu.memory_space<vmem>>, %arg11: memref<4x1xf32, #tpu.memory_space<vmem>>, %arg12: memref<4x1xf32, #tpu.memory_space<vmem>>, %arg13: memref<4x1xf32, #tpu.memory_space<vmem>>, %arg14: memref<4x128xf32, #tpu.memory_space<vmem>>, %arg15: memref<4x128xf32, #tpu.memory_space<vmem>>, %arg16: memref<1x1x4x128xf32, #tpu.memory_space<vmem>>, %arg17: memref<4x4xf32, #tpu.memory_space<vmem>>, %arg18: memref<4x4xf32, #tpu.memory_space<vmem>>, %arg19: memref<2x4x128xf32, #tpu.memory_space<vmem>>) attributes {dimension_semantics = [#tpu.dimension_semantics<parallel>, #tpu.dimension_semantics<arbitrary>, #tpu.dimension_semantics<arbitrary>], iteration_bounds = array<i64: 2, 2, 2>, scalar_prefetch = 0 : i64, scratch_operands = 3 : i64, tpu.core_type = #tpu.core_type<tc>, window_params = [{transform_indices = @transform_0, window_bounds = array<i64: 1, 4, 128>}, {transform_indices = @transform_1, window_bounds = array<i64: 1, 4, 1>}, {transform_indices = @transform_2, window_bounds = array<i64: 1, 4, 1>}, {pipeline_mode = #tpu.pipeline_mode<synchronous>, transform_indices = @transform_3, window_bounds = array<i64: 4, 4>}, {pipeline_mode = #tpu.pipeline_mode<synchronous>, transform_indices = @transform_4, window_bounds = array<i64: 4, 4>}, {pipeline_mode = #tpu.pipeline_mode<synchronous>, transform_indices = @transform_5, window_bounds = array<i64: 4, 4>}, {pipeline_mode = #tpu.pipeline_mode<synchronous>, transform_indices = @transform_6, window_bounds = array<i64: 4, 1>}, {pipeline_mode = #tpu.pipeline_mode<synchronous>, transform_indices = @transform_7, window_bounds = array<i64: 4, 1>}, {pipeline_mode = #tpu.pipeline_mode<synchronous>, transform_indices = @transform_8, window_bounds = array<i64: 4, 1>}, {pipeline_mode = #tpu.pipeline_mode<synchronous>, transform_indices = @transform_9, window_bounds = array<i64: 4, 1>}, {pipeline_mode = #tpu.pipeline_mode<synchronous>, transform_indices = @transform_10, window_bounds = array<i64: 4, 1>}, {transform_indices = @transform_11, window_bounds = array<i64: 4, 128>}, {transform_indices = @transform_12, window_bounds = array<i64: 4, 128>}, {transform_indices = @transform_13, window_bounds = array<i64: 1, 1, 4, 128>}]} {
    %c0_i32 = arith.constant 0 : i32
    %0 = arith.cmpi eq, %arg1, %c0_i32 : i32
    %1 = arith.extui %0 : i1 to i32
    %c0_i32_0 = arith.constant 0 : i32
    %2 = arith.cmpi ne, %1, %c0_i32_0 : i32
    scf.if %2 {
      %c0_i32_2 = arith.constant 0 : i32
      %6 = arith.cmpi eq, %arg2, %c0_i32_2 : i32
      %7 = arith.extui %6 : i1 to i32
      %c0_i32_3 = arith.constant 0 : i32
      %8 = arith.cmpi ne, %7, %c0_i32_3 : i32
      scf.if %8 {
        %cst_48 = arith.constant 0.000000e+00 : f32
        %64 = vector.broadcast %cst_48 : f32 to vector<4x4xf32>
        %c0_49 = arith.constant 0 : index
        %c0_50 = arith.constant 0 : index
        %65 = vector.load %arg17[%c0_49, %c0_50] : memref<4x4xf32, #tpu.memory_space<vmem>>, vector<4x4xf32>
        tpu.vector_store %arg17[%c0_49, %c0_50], %64 {strides = array<i32>} : memref<4x4xf32, #tpu.memory_space<vmem>>, vector<4x4xf32>,
      } else {
      }
      %c0 = arith.constant 0 : index
      %c0_4 = arith.constant 0 : index
      %c0_5 = arith.constant 0 : index
      %9 = vector.load %arg3[%c0, %c0_4, %c0_5] : memref<1x4x128xf32, #tpu.memory_space<vmem>>, vector<1x4x128xf32>
      %10 = vector.shape_cast %9 : vector<1x4x128xf32> to vector<4x128xf32>
      %c0_6 = arith.constant 0 : index
      %c0_7 = arith.constant 0 : index
      %11 = vector.load %arg12[%c0_6, %c0_7] : memref<4x1xf32, #tpu.memory_space<vmem>>, vector<4x1xf32>
      %12 = vector.broadcast %11 : vector<4x1xf32> to vector<4x128xf32>
      %13 = arith.addf %10, %12 : vector<4x128xf32>
      %14 = arith.negf %13 : vector<4x128xf32>
      %15 = math.exp %14 : vector<4x128xf32>
      %cst = arith.constant 1.000000e+00 : f32
      %16 = vector.broadcast %cst : f32 to vector<4x128xf32>
      %17 = arith.addf %16, %15 : vector<4x128xf32>
      %18 = arith.divf %16, %17 : vector<4x128xf32>
      %19 = arith.mulf %13, %18 : vector<4x128xf32>
      %c0_8 = arith.constant 0 : index
      %c0_9 = arith.constant 0 : index
      %20 = vector.load %arg13[%c0_8, %c0_9] : memref<4x1xf32, #tpu.memory_space<vmem>>, vector<4x1xf32>
      %21 = vector.broadcast %20 : vector<4x1xf32> to vector<4x128xf32>
      %22 = arith.addf %19, %21 : vector<4x128xf32>
      %c0_10 = arith.constant 0 : index
      %c0_11 = arith.constant 0 : index
      %23 = vector.load %arg6[%c0_10, %c0_11] : memref<4x4xf32, #tpu.memory_space<vmem>>, vector<4x4xf32>
      %cst_12 = arith.constant dense<0.000000e+00> : vector<4x128xf32>
      %24 = tpu.matmul %23, %22, %cst_12 {dimension_numbers = #tpu.dot_dimension_numbers<[1], [0], [0], [1], [0, 0, 1, 1], [], []>} : vector<4x4xf32>, vector<4x128xf32>, vector<4x128xf32> -> vector<4x128xf32>
      %c0_13 = arith.constant 0 : index
      %c0_14 = arith.constant 0 : index
      %25 = vector.load %arg9[%c0_13, %c0_14] : memref<4x1xf32, #tpu.memory_space<vmem>>, vector<4x1xf32>
      %26 = vector.broadcast %25 : vector<4x1xf32> to vector<4x128xf32>
      %27 = arith.addf %24, %26 : vector<4x128xf32>
      %c0_15 = arith.constant 0 : index
      %c0_16 = arith.constant 0 : index
      %28 = vector.load %arg14[%c0_15, %c0_16] : memref<4x128xf32, #tpu.memory_space<vmem>>, vector<4x128xf32>
      %29 = arith.addf %27, %28 : vector<4x128xf32>
      %c0_17 = arith.constant 0 : index
      %c0_18 = arith.constant 0 : index
      %c0_19 = arith.constant 0 : index
      %30 = vector.load %arg4[%c0_17, %c0_18, %c0_19] : memref<1x4x1xf32, #tpu.memory_space<vmem>>, vector<1x4x1xf32>
      %31 = vector.shape_cast %30 : vector<1x4x1xf32> to vector<4x1xf32>
      %32 = vector.broadcast %31 : vector<4x1xf32> to vector<4x128xf32>
      %33 = arith.mulf %29, %32 : vector<4x128xf32>
      %c0_20 = arith.constant 0 : index
      %c0_21 = arith.constant 0 : index
      %c0_22 = arith.constant 0 : index
      %34 = vector.load %arg5[%c0_20, %c0_21, %c0_22] : memref<1x4x1xf32, #tpu.memory_space<vmem>>, vector<1x4x1xf32>
      %35 = vector.shape_cast %34 : vector<1x4x1xf32> to vector<4x1xf32>
      %36 = vector.broadcast %35 : vector<4x1xf32> to vector<4x128xf32>
      %37 = arith.addf %33, %36 : vector<4x128xf32>
      %c0_23 = arith.constant 0 : index
      %c0_24 = arith.constant 0 : index
      %38 = vector.load %arg7[%c0_23, %c0_24] : memref<4x4xf32, #tpu.memory_space<vmem>>, vector<4x4xf32>
      %cst_25 = arith.constant dense<0.000000e+00> : vector<4x128xf32>
      %39 = tpu.matmul %38, %22, %cst_25 {dimension_numbers = #tpu.dot_dimension_numbers<[1], [0], [0], [1], [0, 0, 1, 1], [], []>} : vector<4x4xf32>, vector<4x128xf32>, vector<4x128xf32> -> vector<4x128xf32>
      %c0_26 = arith.constant 0 : index
      %c0_27 = arith.constant 0 : index
      %40 = vector.load %arg10[%c0_26, %c0_27] : memref<4x1xf32, #tpu.memory_space<vmem>>, vector<4x1xf32>
      %41 = vector.broadcast %40 : vector<4x1xf32> to vector<4x128xf32>
      %42 = arith.addf %39, %41 : vector<4x128xf32>
      %c0_28 = arith.constant 0 : index
      %c0_29 = arith.constant 0 : index
      %43 = vector.load %arg15[%c0_28, %c0_29] : memref<4x128xf32, #tpu.memory_space<vmem>>, vector<4x128xf32>
      %44 = arith.addf %42, %43 : vector<4x128xf32>
      %c0_30 = arith.constant 0 : index
      %c0_31 = arith.constant 0 : index
      %45 = vector.load %arg17[%c0_30, %c0_31] : memref<4x4xf32, #tpu.memory_space<vmem>>, vector<4x4xf32>
      %cst_32 = arith.constant dense<0.000000e+00> : vector<4x4xf32>
      %46 = tpu.matmul %37, %44, %cst_32 {dimension_numbers = #tpu.dot_dimension_numbers<[1], [1], [0], [0], [0, 0, 1, 0], [], []>} : vector<4x128xf32>, vector<4x128xf32>, vector<4x4xf32> -> vector<4x4xf32>
      %47 = arith.addf %45, %46 : vector<4x4xf32>
      %c0_33 = arith.constant 0 : index
      %c0_34 = arith.constant 0 : index
      %48 = vector.load %arg17[%c0_33, %c0_34] : memref<4x4xf32, #tpu.memory_space<vmem>>, vector<4x4xf32>
      tpu.vector_store %arg17[%c0_33, %c0_34], %47 {strides = array<i32>} : memref<4x4xf32, #tpu.memory_space<vmem>>, vector<4x4xf32>,
      %c0_35 = arith.constant 0 : index
      %c0_36 = arith.constant 0 : index
      %49 = vector.load %arg8[%c0_35, %c0_36] : memref<4x4xf32, #tpu.memory_space<vmem>>, vector<4x4xf32>
      %cst_37 = arith.constant dense<0.000000e+00> : vector<4x128xf32>
      %50 = tpu.matmul %49, %22, %cst_37 {dimension_numbers = #tpu.dot_dimension_numbers<[1], [0], [0], [1], [0, 0, 1, 1], [], []>} : vector<4x4xf32>, vector<4x128xf32>, vector<4x128xf32> -> vector<4x128xf32>
      %c0_38 = arith.constant 0 : index
      %c0_39 = arith.constant 0 : index
      %51 = vector.load %arg11[%c0_38, %c0_39] : memref<4x1xf32, #tpu.memory_space<vmem>>, vector<4x1xf32>
      %52 = vector.broadcast %51 : vector<4x1xf32> to vector<4x128xf32>
      %53 = arith.addf %50, %52 : vector<4x128xf32>
      %54 = arith.index_cast %arg2 : i32 to index
      %c0_40 = arith.constant 0 : index
      %c0_41 = arith.constant 0 : index
      %55 = vector.load %arg19[%54, %c0_40, %c0_41] : memref<2x4x128xf32, #tpu.memory_space<vmem>>, vector<1x4x128xf32>
      %56 = vector.shape_cast %55 : vector<1x4x128xf32> to vector<4x128xf32>
      %57 = vector.shape_cast %53 : vector<4x128xf32> to vector<1x4x128xf32>
      tpu.vector_store %arg19[%54, %c0_40, %c0_41], %57 {strides = array<i32>} : memref<2x4x128xf32, #tpu.memory_space<vmem>>, vector<1x4x128xf32>,
      %c0_42 = arith.constant 0 : index
      %c0_43 = arith.constant 0 : index
      %c0_44 = arith.constant 0 : index
      %c0_45 = arith.constant 0 : index
      %58 = vector.load %arg16[%c0_42, %c0_43, %c0_44, %c0_45] : memref<1x1x4x128xf32, #tpu.memory_space<vmem>>, vector<1x1x4x128xf32>
      %59 = vector.shape_cast %58 : vector<1x1x4x128xf32> to vector<4x128xf32>
      %60 = vector.shape_cast %19 : vector<4x128xf32> to vector<1x1x4x128xf32>
      tpu.vector_store %arg16[%c0_42, %c0_43, %c0_44, %c0_45], %60 {strides = array<i32>} : memref<1x1x4x128xf32, #tpu.memory_space<vmem>>, vector<1x1x4x128xf32>,
      %c1_i32_46 = arith.constant 1 : i32
      %61 = arith.cmpi eq, %arg2, %c1_i32_46 : i32
      %62 = arith.extui %61 : i1 to i32
      %c0_i32_47 = arith.constant 0 : i32
      %63 = arith.cmpi ne, %62, %c0_i32_47 : i32
      scf.if %63 {
        %c0_48 = arith.constant 0 : index
        %c0_49 = arith.constant 0 : index
        %64 = vector.load %arg17[%c0_48, %c0_49] : memref<4x4xf32, #tpu.memory_space<vmem>>, vector<4x4xf32>
        %cst_50 = arith.constant 5.000000e-01 : f32
        %65 = vector.broadcast %cst_50 : f32 to vector<4x4xf32>
        %66 = arith.mulf %64, %65 : vector<4x4xf32>
        %cst_51 = arith.constant dense<0xFF800000> : vector<4xf32>
        %67 = vector.multi_reduction <maximumf>, %66, %cst_51 [1] : vector<4x4xf32> to vector<4xf32>
        %68 = vector.shape_cast %67 : vector<4xf32> to vector<4x1xf32>
        %69 = vector.broadcast %68 : vector<4x1xf32> to vector<4x4xf32>
        %70 = arith.subf %66, %69 : vector<4x4xf32>
        %71 = math.exp %70 : vector<4x4xf32>
        %cst_52 = arith.constant dense<0.000000e+00> : vector<4xf32>
        %72 = vector.multi_reduction <add>, %71, %cst_52 [1] : vector<4x4xf32> to vector<4xf32>
        %73 = vector.shape_cast %72 : vector<4xf32> to vector<4x1xf32>
        %cst_53 = arith.constant 1.000000e+00 : f32
        %74 = vector.broadcast %cst_53 : f32 to vector<4x1xf32>
        %75 = arith.divf %74, %73 : vector<4x1xf32>
        %76 = vector.broadcast %75 : vector<4x1xf32> to vector<4x4xf32>
        %77 = arith.mulf %71, %76 : vector<4x4xf32>
        %c0_54 = arith.constant 0 : index
        %c0_55 = arith.constant 0 : index
        %78 = vector.load %arg18[%c0_54, %c0_55] : memref<4x4xf32, #tpu.memory_space<vmem>>, vector<4x4xf32>
        tpu.vector_store %arg18[%c0_54, %c0_55], %77 {strides = array<i32>} : memref<4x4xf32, #tpu.memory_space<vmem>>, vector<4x4xf32>,
      } else {
      }
    } else {
    }
    %c1_i32 = arith.constant 1 : i32
    %3 = arith.cmpi eq, %arg1, %c1_i32 : i32
    %4 = arith.extui %3 : i1 to i32
    %c0_i32_1 = arith.constant 0 : i32
    %5 = arith.cmpi ne, %4, %c0_i32_1 : i32
    scf.if %5 {
      %6 = arith.index_cast %arg2 : i32 to index
      %c0 = arith.constant 0 : index
      %c0_2 = arith.constant 0 : index
      %7 = vector.load %arg19[%6, %c0, %c0_2] : memref<2x4x128xf32, #tpu.memory_space<vmem>>, vector<1x4x128xf32>
      %8 = vector.shape_cast %7 : vector<1x4x128xf32> to vector<4x128xf32>
      %c0_3 = arith.constant 0 : index
      %c0_4 = arith.constant 0 : index
      %9 = vector.load %arg18[%c0_3, %c0_4] : memref<4x4xf32, #tpu.memory_space<vmem>>, vector<4x4xf32>
      %cst = arith.constant dense<0.000000e+00> : vector<4x128xf32>
      %10 = tpu.matmul %9, %8, %cst {dimension_numbers = #tpu.dot_dimension_numbers<[1], [0], [0], [1], [0, 0, 1, 1], [], []>} : vector<4x4xf32>, vector<4x128xf32>, vector<4x128xf32> -> vector<4x128xf32>
      %c0_5 = arith.constant 0 : index
      %c0_6 = arith.constant 0 : index
      %c0_7 = arith.constant 0 : index
      %c0_8 = arith.constant 0 : index
      %11 = vector.load %arg16[%c0_5, %c0_6, %c0_7, %c0_8] : memref<1x1x4x128xf32, #tpu.memory_space<vmem>>, vector<1x1x4x128xf32>
      %12 = vector.shape_cast %11 : vector<1x1x4x128xf32> to vector<4x128xf32>
      %13 = vector.shape_cast %10 : vector<4x128xf32> to vector<1x1x4x128xf32>
      tpu.vector_store %arg16[%c0_5, %c0_6, %c0_7, %c0_8], %13 {strides = array<i32>} : memref<1x1x4x128xf32, #tpu.memory_space<vmem>>, vector<1x1x4x128xf32>,
    } else {
    }
    return
  }
  func.func @transform_0(%arg0: i32, %arg1: i32, %arg2: i32) -> (i32, i32, i32) {
    %c1_i32 = arith.constant 1 : i32
    %0 = arith.subi %c1_i32, %arg1 : i32
    %1 = arith.muli %arg2, %0 : i32
    %c1_i32_0 = arith.constant 1 : i32
    %2 = arith.muli %c1_i32_0, %arg1 : i32
    %3 = arith.addi %1, %2 : i32
    %c0_i32 = arith.constant 0 : i32
    %c0_i32_1 = arith.constant 0 : i32
    return %arg0, %c0_i32, %3 : i32, i32, i32
  }
  func.func @transform_1(%arg0: i32, %arg1: i32, %arg2: i32) -> (i32, i32, i32) {
    %c0_i32 = arith.constant 0 : i32
    %c0_i32_0 = arith.constant 0 : i32
    %c0_i32_1 = arith.constant 0 : i32
    return %arg0, %c0_i32, %c0_i32_0 : i32, i32, i32
  }
  func.func @transform_2(%arg0: i32, %arg1: i32, %arg2: i32) -> (i32, i32, i32) {
    %c0_i32 = arith.constant 0 : i32
    %c0_i32_0 = arith.constant 0 : i32
    %c0_i32_1 = arith.constant 0 : i32
    return %arg0, %c0_i32, %c0_i32_0 : i32, i32, i32
  }
  func.func @transform_3(%arg0: i32, %arg1: i32, %arg2: i32) -> (i32, i32) {
    %c0_i32 = arith.constant 0 : i32
    %c0_i32_0 = arith.constant 0 : i32
    %c0_i32_1 = arith.constant 0 : i32
    return %c0_i32, %c0_i32_0 : i32, i32
  }
  func.func @transform_4(%arg0: i32, %arg1: i32, %arg2: i32) -> (i32, i32) {
    %c0_i32 = arith.constant 0 : i32
    %c0_i32_0 = arith.constant 0 : i32
    %c0_i32_1 = arith.constant 0 : i32
    return %c0_i32, %c0_i32_0 : i32, i32
  }
  func.func @transform_5(%arg0: i32, %arg1: i32, %arg2: i32) -> (i32, i32) {
    %c0_i32 = arith.constant 0 : i32
    %c0_i32_0 = arith.constant 0 : i32
    %c0_i32_1 = arith.constant 0 : i32
    return %c0_i32, %c0_i32_0 : i32, i32
  }
  func.func @transform_6(%arg0: i32, %arg1: i32, %arg2: i32) -> (i32, i32) {
    %c0_i32 = arith.constant 0 : i32
    %c0_i32_0 = arith.constant 0 : i32
    %c0_i32_1 = arith.constant 0 : i32
    return %c0_i32, %c0_i32_0 : i32, i32
  }
  func.func @transform_7(%arg0: i32, %arg1: i32, %arg2: i32) -> (i32, i32) {
    %c0_i32 = arith.constant 0 : i32
    %c0_i32_0 = arith.constant 0 : i32
    %c0_i32_1 = arith.constant 0 : i32
    return %c0_i32, %c0_i32_0 : i32, i32
  }
  func.func @transform_8(%arg0: i32, %arg1: i32, %arg2: i32) -> (i32, i32) {
    %c0_i32 = arith.constant 0 : i32
    %c0_i32_0 = arith.constant 0 : i32
    %c0_i32_1 = arith.constant 0 : i32
    return %c0_i32, %c0_i32_0 : i32, i32
  }
  func.func @transform_9(%arg0: i32, %arg1: i32, %arg2: i32) -> (i32, i32) {
    %c0_i32 = arith.constant 0 : i32
    %c0_i32_0 = arith.constant 0 : i32
    %c0_i32_1 = arith.constant 0 : i32
    return %c0_i32, %c0_i32_0 : i32, i32
  }
  func.func @transform_10(%arg0: i32, %arg1: i32, %arg2: i32) -> (i32, i32) {
    %c0_i32 = arith.constant 0 : i32
    %c0_i32_0 = arith.constant 0 : i32
    %c0_i32_1 = arith.constant 0 : i32
    return %c0_i32, %c0_i32_0 : i32, i32
  }
  func.func @transform_11(%arg0: i32, %arg1: i32, %arg2: i32) -> (i32, i32) {
    %c1_i32 = arith.constant 1 : i32
    %0 = arith.subi %c1_i32, %arg1 : i32
    %1 = arith.muli %arg2, %0 : i32
    %c1_i32_0 = arith.constant 1 : i32
    %2 = arith.muli %c1_i32_0, %arg1 : i32
    %3 = arith.addi %1, %2 : i32
    %c0_i32 = arith.constant 0 : i32
    %c0_i32_1 = arith.constant 0 : i32
    return %c0_i32, %3 : i32, i32
  }
  func.func @transform_12(%arg0: i32, %arg1: i32, %arg2: i32) -> (i32, i32) {
    %c1_i32 = arith.constant 1 : i32
    %0 = arith.subi %c1_i32, %arg1 : i32
    %1 = arith.muli %arg2, %0 : i32
    %c1_i32_0 = arith.constant 1 : i32
    %2 = arith.muli %c1_i32_0, %arg1 : i32
    %3 = arith.addi %1, %2 : i32
    %c0_i32 = arith.constant 0 : i32
    %c0_i32_1 = arith.constant 0 : i32
    return %c0_i32, %3 : i32, i32
  }
  func.func @transform_13(%arg0: i32, %arg1: i32, %arg2: i32) -> (i32, i32, i32, i32) {
    %c0_i32 = arith.constant 0 : i32
    %c0_i32_0 = arith.constant 0 : i32
    return %arg0, %arg1, %c0_i32, %arg2 : i32, i32, i32, i32
  }
}

</mosaic_0001>

<llo_original>
// kernel: tpu_custom_call.1
$region0: #{tpu_custom_call.1}
  #allocation0 [shape = 'u32[]', space=smem, size = 0x4, offset = 0x4, fixed_abs, tag = 'smem constant byte address 0x4 - core index']
  #allocation1 [shape = 'u32[144,128]{1,0:T(1,128)}', space=vmem, size = 0x12000, scoped, tag = 'internal scratch']
  #allocation2 [shape = 'f32[4,4]{1,0:T(4,128)}', space=vmem, size = 0x800, scoped, tag = 'scratch operand']
  #allocation3 [shape = 'f32[4,4]{1,0:T(4,128)}', space=vmem, size = 0x800, scoped, tag = 'scratch operand']
  #allocation4 [shape = 'f32[2,4,128]{2,1,0:T(4,128)}', space=vmem, size = 0x1000, scoped, tag = 'scratch operand']
  %s0 = inlined_call_operand.vmem [shape: f32[2,4,256], index: 0, kind: input, shape index: {}]
  %s1 = inlined_call_operand.vmem [shape: f32[2,4,1], index: 1, kind: input, shape index: {}]
  %s2 = inlined_call_operand.vmem [shape: f32[2,4,1], index: 2, kind: input, shape index: {}]
  %s3 = inlined_call_operand.vmem [shape: f32[4,4], index: 3, kind: input, shape index: {}]
  %s4 = inlined_call_operand.vmem [shape: f32[4,4], index: 4, kind: input, shape index: {}]
  %s5 = inlined_call_operand.vmem [shape: f32[4,4], index: 5, kind: input, shape index: {}]
  %s6 = inlined_call_operand.vmem [shape: f32[4,1], index: 6, kind: input, shape index: {}]
  %s7 = inlined_call_operand.vmem [shape: f32[4,1], index: 7, kind: input, shape index: {}]
  %s8 = inlined_call_operand.vmem [shape: f32[4,1], index: 8, kind: input, shape index: {}]
  %s9 = inlined_call_operand.vmem [shape: f32[4,1], index: 9, kind: input, shape index: {}]
  %s10 = inlined_call_operand.vmem [shape: f32[4,1], index: 10, kind: input, shape index: {}]
  %s11 = inlined_call_operand.vmem [shape: f32[4,256], index: 11, kind: input, shape index: {}]
  %s12 = inlined_call_operand.vmem [shape: f32[4,256], index: 12, kind: input, shape index: {}]
  %s13 = inlined_call_operand.hbm [shape: f32[2,2,4,256], index: 13, kind: output, shape index: {}]
  %s14 = sld [smem:[#allocation0]]
  $region101: #{tpu_custom_call.1} parent=0
    _
  %s16 = ssub.s32 1, %s14
  %s17 = scalar_select 0, %s16, %s14
  $region1: #{tpu_custom_call.1} parent=0
    #allocation5 [shape = 'u8[4096]{0}', space=vmem, size = 0x1000, scoped, tag = 'output window, operand 0']
    #allocation6 [shape = 's32[2]{0}', space=sflag, size = 0x8, scoped, tag = 'scoped memory for tpu_custom_call.1']
    %18 = vsyncpa [#allocation6], 0
    %s19 = scalar_lea.sflag [#allocation6], 1
    %20 = vsyncpa %s19, 0
    loop: start=0, step=1, limit=10
    $region2: #{tpu_custom_call.1} parent=1 // loop_pre_header
      _
    $region3: #{tpu_custom_call.1} parent=1 // loop_header
      %s22 = sphi 0, %s26
      %p23 = scmp.ge.s32.totalorder %s22, 10
      %s29 = sphi 0, %s48
      %s30 = sphi 0, %s44
      %s31 = sphi 0, %s40
      %s32 = sphi 0, %s29
      %s33 = sphi 0, %s30
      %s34 = sphi 0, %s31
      %s35 = sphi 0, %s32
      %s36 = sphi 0, %s33
      %s37 = sphi 0, %s34
      %s59 = sphi 0, %s61
      %s62 = sphi 0, %s59
      %s63 = sphi 0, %s62
      %s79 = sphi 0, %s63
      %s85 = sphi 0, %s87
      %s88 = sphi 0, %s85
      %s89 = sphi 0, %s88
      %s105 = sphi 0, %s89
      %s111 = sphi 0, %s113
      %s114 = sphi 0, %s111
      %s115 = sphi 0, %s114
      %s131 = sphi 0, %s115
      %s135 = sphi 0, %s135
      %s137 = sphi 0, %s135
      %s138 = sphi 0, %s137
      %s152 = sphi 0, %s138
      %s156 = sphi 0, %s156
      %s158 = sphi 0, %s156
      %s159 = sphi 0, %s158
      %s173 = sphi 0, %s159
      %s177 = sphi 0, %s177
      %s179 = sphi 0, %s177
      %s180 = sphi 0, %s179
      %s194 = sphi 0, %s180
      %s198 = sphi 0, %s198
      %s200 = sphi 0, %s198
      %s201 = sphi 0, %s200
      %s215 = sphi 0, %s201
      %s219 = sphi 0, %s219
      %s221 = sphi 0, %s219
      %s222 = sphi 0, %s221
      %s236 = sphi 0, %s222
      %s240 = sphi 0, %s240
      %s242 = sphi 0, %s240
      %s243 = sphi 0, %s242
      %s257 = sphi 0, %s243
      %s261 = sphi 0, %s261
      %s263 = sphi 0, %s261
      %s264 = sphi 0, %s263
      %s278 = sphi 0, %s264
      %s282 = sphi 0, %s282
      %s284 = sphi 0, %s282
      %s285 = sphi 0, %s284
      %s299 = sphi 0, %s285
      %s311 = sphi 0, %s313
      %s314 = sphi 0, %s311
      %s315 = sphi 0, %s314
      %s331 = sphi 0, %s315
      %s343 = sphi 0, %s345
      %s346 = sphi 0, %s343
      %s347 = sphi 0, %s346
      %s363 = sphi 0, %s347
      %s373 = sphi 0, %s375
      %s376 = sphi 0, %s373
      %s377 = sphi 0, %s376
      %s393 = sphi 0, %s377
    $region4: #{tpu_custom_call.1} parent=1 // loop_header_branch
      %25 = sbr.rel (%p23) target = $region8
    $region5: #{tpu_custom_call.1} parent=1 // loop_body
      %s27 = ssub.s32 %s22, 1
      %s28 = ssub.s32 %s22, 2
      %s38 = sadd.s32 1, %s31
      %p39 = scmp.ge.s32.totalorder %s38, 2
      %s40 = scalar_select %p39, 0, %s38
      %s41 = sadd.s32 1, %s30
      %s42 = scalar_select %p39, %s41, %s30
      %p43 = scmp.ge.s32.totalorder %s42, 2
      %s44 = scalar_select %p43, 0, %s42
      %s45 = sadd.s32 1, %s29
      %s46 = scalar_select %p43, %s45, %s29
      %p47 = scmp.ge.s32.totalorder %s46, 2
      %s48 = scalar_select %p47, 0, %s46
      %s49 = ssub.s32 1, %s30
      %s50 = smul.u32 %s31, %s49
      %s51 = sadd.s32 %s50, %s30
      %s52 = ssub.s32 1, %s44
      %s53 = smul.u32 %s40, %s52
      %s54 = sadd.s32 %s53, %s44
      %s55 = ssub.s32 %s29, %s48
      %s56 = ssub.s32 %s51, %s54
      %s57 = sor.u32 %s55, %s56
      %p58 = scmp.eq.s32.totalorder %s57, 0
      %s60 = sadd.s32 %s59, 1
      %s61 = scalar_select %p58, %s59, %s60
      %p64 = pneg %p58
      %p65 = scmp.eq.s32.totalorder %s22, 7
      %p66 = por %p64, %p65
      %p67 = scmp.ne.s32.totalorder %s59, %s62
      %p68 = scmp.eq.s32.totalorder %s22, 0
      %p69 = por %p67, %p68
      %p70 = scmp.ne.s32.totalorder %s59, %s62
      %p71 = scmp.eq.s32.totalorder %s27, 7
      %p72 = por %p70, %p71
      %p73 = scmp.ne.s32.totalorder %s62, %s63
      %p74 = scmp.eq.s32.totalorder %s27, 0
      %p75 = por %p73, %p74
      %p76 = scmp.ne.s32.totalorder %s62, %s63
      %p77 = scmp.eq.s32.totalorder %s28, 7
      %p78 = por %p76, %p77
      %p80 = scmp.ne.s32.totalorder %s63, %s79
      %p81 = scmp.eq.s32.totalorder %s28, 0
      %p82 = por %p80, %p81
      %s83 = ssub.s32 %s29, %s48
      %p84 = scmp.eq.s32.totalorder %s83, 0
      %s86 = sadd.s32 %s85, 1
      %s87 = scalar_select %p84, %s85, %s86
      %p90 = pneg %p84
      %p91 = scmp.eq.s32.totalorder %s22, 7
      %p92 = por %p90, %p91
      %p93 = scmp.ne.s32.totalorder %s85, %s88
      %p94 = scmp.eq.s32.totalorder %s22, 0
      %p95 = por %p93, %p94
      %p96 = scmp.ne.s32.totalorder %s85, %s88
      %p97 = scmp.eq.s32.totalorder %s27, 7
      %p98 = por %p96, %p97
      %p99 = scmp.ne.s32.totalorder %s88, %s89
      %p100 = scmp.eq.s32.totalorder %s27, 0
      %p101 = por %p99, %p100
      %p102 = scmp.ne.s32.totalorder %s88, %s89
      %p103 = scmp.eq.s32.totalorder %s28, 7
      %p104 = por %p102, %p103
      %p106 = scmp.ne.s32.totalorder %s89, %s105
      %p107 = scmp.eq.s32.totalorder %s28, 0
      %p108 = por %p106, %p107
      %s109 = ssub.s32 %s29, %s48
      %p110 = scmp.eq.s32.totalorder %s109, 0
      %s112 = sadd.s32 %s111, 1
      %s113 = scalar_select %p110, %s111, %s112
      %p116 = pneg %p110
      %p117 = scmp.eq.s32.totalorder %s22, 7
      %p118 = por %p116, %p117
      %p119 = scmp.ne.s32.totalorder %s111, %s114
      %p120 = scmp.eq.s32.totalorder %s22, 0
      %p121 = por %p119, %p120
      %p122 = scmp.ne.s32.totalorder %s111, %s114
      %p123 = scmp.eq.s32.totalorder %s27, 7
      %p124 = por %p122, %p123
      %p125 = scmp.ne.s32.totalorder %s114, %s115
      %p126 = scmp.eq.s32.totalorder %s27, 0
      %p127 = por %p125, %p126
      %p128 = scmp.ne.s32.totalorder %s114, %s115
      %p129 = scmp.eq.s32.totalorder %s28, 7
      %p130 = por %p128, %p129
      %p132 = scmp.ne.s32.totalorder %s115, %s131
      %p133 = scmp.eq.s32.totalorder %s28, 0
      %p134 = por %p132, %p133
      %s136 = sadd.s32 %s135, 1
      %p139 = scmp.eq.s32.totalorder %s22, 7
      %p140 = scmp.ne.s32.totalorder %s135, %s137
      %p141 = scmp.eq.s32.totalorder %s22, 0
      %p142 = por %p140, %p141
      %p143 = scmp.ne.s32.totalorder %s135, %s137
      %p144 = scmp.eq.s32.totalorder %s27, 7
      %p145 = por %p143, %p144
      %p146 = scmp.ne.s32.totalorder %s137, %s138
      %p147 = scmp.eq.s32.totalorder %s27, 0
      %p148 = por %p146, %p147
      %p149 = scmp.ne.s32.totalorder %s137, %s138
      %p150 = scmp.eq.s32.totalorder %s28, 7
      %p151 = por %p149, %p150
      %p153 = scmp.ne.s32.totalorder %s138, %s152
      %p154 = scmp.eq.s32.totalorder %s28, 0
      %p155 = por %p153, %p154
      %s157 = sadd.s32 %s156, 1
      %p160 = scmp.eq.s32.totalorder %s22, 7
      %p161 = scmp.ne.s32.totalorder %s156, %s158
      %p162 = scmp.eq.s32.totalorder %s22, 0
      %p163 = por %p161, %p162
      %p164 = scmp.ne.s32.totalorder %s156, %s158
      %p165 = scmp.eq.s32.totalorder %s27, 7
      %p166 = por %p164, %p165
      %p167 = scmp.ne.s32.totalorder %s158, %s159
      %p168 = scmp.eq.s32.totalorder %s27, 0
      %p169 = por %p167, %p168
      %p170 = scmp.ne.s32.totalorder %s158, %s159
      %p171 = scmp.eq.s32.totalorder %s28, 7
      %p172 = por %p170, %p171
      %p174 = scmp.ne.s32.totalorder %s159, %s173
      %p175 = scmp.eq.s32.totalorder %s28, 0
      %p176 = por %p174, %p175
      %s178 = sadd.s32 %s177, 1
      %p181 = scmp.eq.s32.totalorder %s22, 7
      %p182 = scmp.ne.s32.totalorder %s177, %s179
      %p183 = scmp.eq.s32.totalorder %s22, 0
      %p184 = por %p182, %p183
      %p185 = scmp.ne.s32.totalorder %s177, %s179
      %p186 = scmp.eq.s32.totalorder %s27, 7
      %p187 = por %p185, %p186
      %p188 = scmp.ne.s32.totalorder %s179, %s180
      %p189 = scmp.eq.s32.totalorder %s27, 0
      %p190 = por %p188, %p189
      %p191 = scmp.ne.s32.totalorder %s179, %s180
      %p192 = scmp.eq.s32.totalorder %s28, 7
      %p193 = por %p191, %p192
      %p195 = scmp.ne.s32.totalorder %s180, %s194
      %p196 = scmp.eq.s32.totalorder %s28, 0
      %p197 = por %p195, %p196
      %s199 = sadd.s32 %s198, 1
      %p202 = scmp.eq.s32.totalorder %s22, 7
      %p203 = scmp.ne.s32.totalorder %s198, %s200
      %p204 = scmp.eq.s32.totalorder %s22, 0
      %p205 = por %p203, %p204
      %p206 = scmp.ne.s32.totalorder %s198, %s200
      %p207 = scmp.eq.s32.totalorder %s27, 7
      %p208 = por %p206, %p207
      %p209 = scmp.ne.s32.totalorder %s200, %s201
      %p210 = scmp.eq.s32.totalorder %s27, 0
      %p211 = por %p209, %p210
      %p212 = scmp.ne.s32.totalorder %s200, %s201
      %p213 = scmp.eq.s32.totalorder %s28, 7
      %p214 = por %p212, %p213
      %p216 = scmp.ne.s32.totalorder %s201, %s215
      %p217 = scmp.eq.s32.totalorder %s28, 0
      %p218 = por %p216, %p217
      %s220 = sadd.s32 %s219, 1
      %p223 = scmp.eq.s32.totalorder %s22, 7
      %p224 = scmp.ne.s32.totalorder %s219, %s221
      %p225 = scmp.eq.s32.totalorder %s22, 0
      %p226 = por %p224, %p225
      %p227 = scmp.ne.s32.totalorder %s219, %s221
      %p228 = scmp.eq.s32.totalorder %s27, 7
      %p229 = por %p227, %p228
      %p230 = scmp.ne.s32.totalorder %s221, %s222
      %p231 = scmp.eq.s32.totalorder %s27, 0
      %p232 = por %p230, %p231
      %p233 = scmp.ne.s32.totalorder %s221, %s222
      %p234 = scmp.eq.s32.totalorder %s28, 7
      %p235 = por %p233, %p234
      %p237 = scmp.ne.s32.totalorder %s222, %s236
      %p238 = scmp.eq.s32.totalorder %s28, 0
      %p239 = por %p237, %p238
      %s241 = sadd.s32 %s240, 1
      %p244 = scmp.eq.s32.totalorder %s22, 7
      %p245 = scmp.ne.s32.totalorder %s240, %s242
      %p246 = scmp.eq.s32.totalorder %s22, 0
      %p247 = por %p245, %p246
      %p248 = scmp.ne.s32.totalorder %s240, %s242
      %p249 = scmp.eq.s32.totalorder %s27, 7
      %p250 = por %p248, %p249
      %p251 = scmp.ne.s32.totalorder %s242, %s243
      %p252 = scmp.eq.s32.totalorder %s27, 0
      %p253 = por %p251, %p252
      %p254 = scmp.ne.s32.totalorder %s242, %s243
      %p255 = scmp.eq.s32.totalorder %s28, 7
      %p256 = por %p254, %p255
      %p258 = scmp.ne.s32.totalorder %s243, %s257
      %p259 = scmp.eq.s32.totalorder %s28, 0
      %p260 = por %p258, %p259
      %s262 = sadd.s32 %s261, 1
      %p265 = scmp.eq.s32.totalorder %s22, 7
      %p266 = scmp.ne.s32.totalorder %s261, %s263
      %p267 = scmp.eq.s32.totalorder %s22, 0
      %p268 = por %p266, %p267
      %p269 = scmp.ne.s32.totalorder %s261, %s263
      %p270 = scmp.eq.s32.totalorder %s27, 7
      %p271 = por %p269, %p270
      %p272 = scmp.ne.s32.totalorder %s263, %s264
      %p273 = scmp.eq.s32.totalorder %s27, 0
      %p274 = por %p272, %p273
      %p275 = scmp.ne.s32.totalorder %s263, %s264
      %p276 = scmp.eq.s32.totalorder %s28, 7
      %p277 = por %p275, %p276
      %p279 = scmp.ne.s32.totalorder %s264, %s278
      %p280 = scmp.eq.s32.totalorder %s28, 0
      %p281 = por %p279, %p280
      %s283 = sadd.s32 %s282, 1
      %p286 = scmp.eq.s32.totalorder %s22, 7
      %p287 = scmp.ne.s32.totalorder %s282, %s284
      %p288 = scmp.eq.s32.totalorder %s22, 0
      %p289 = por %p287, %p288
      %p290 = scmp.ne.s32.totalorder %s282, %s284
      %p291 = scmp.eq.s32.totalorder %s27, 7
      %p292 = por %p290, %p291
      %p293 = scmp.ne.s32.totalorder %s284, %s285
      %p294 = scmp.eq.s32.totalorder %s27, 0
      %p295 = por %p293, %p294
      %p296 = scmp.ne.s32.totalorder %s284, %s285
      %p297 = scmp.eq.s32.totalorder %s28, 7
      %p298 = por %p296, %p297
      %p300 = scmp.ne.s32.totalorder %s285, %s299
      %p301 = scmp.eq.s32.totalorder %s28, 0
      %p302 = por %p300, %p301
      %s303 = ssub.s32 1, %s30
      %s304 = smul.u32 %s31, %s303
      %s305 = sadd.s32 %s304, %s30
      %s306 = ssub.s32 1, %s44
      %s307 = smul.u32 %s40, %s306
      %s308 = sadd.s32 %s307, %s44
      %s309 = ssub.s32 %s305, %s308
      %p310 = scmp.eq.s32.totalorder %s309, 0
      %s312 = sadd.s32 %s311, 1
      %s313 = scalar_select %p310, %s311, %s312
      %p316 = pneg %p310
      %p317 = scmp.eq.s32.totalorder %s22, 7
      %p318 = por %p316, %p317
      %p319 = scmp.ne.s32.totalorder %s311, %s314
      %p320 = scmp.eq.s32.totalorder %s22, 0
      %p321 = por %p319, %p320
      %p322 = scmp.ne.s32.totalorder %s311, %s314
      %p323 = scmp.eq.s32.totalorder %s27, 7
      %p324 = por %p322, %p323
      %p325 = scmp.ne.s32.totalorder %s314, %s315
      %p326 = scmp.eq.s32.totalorder %s27, 0
      %p327 = por %p325, %p326
      %p328 = scmp.ne.s32.totalorder %s314, %s315
      %p329 = scmp.eq.s32.totalorder %s28, 7
      %p330 = por %p328, %p329
      %p332 = scmp.ne.s32.totalorder %s315, %s331
      %p333 = scmp.eq.s32.totalorder %s28, 0
      %p334 = por %p332, %p333
      %s335 = ssub.s32 1, %s30
      %s336 = smul.u32 %s31, %s335
      %s337 = sadd.s32 %s336, %s30
      %s338 = ssub.s32 1, %s44
      %s339 = smul.u32 %s40, %s338
      %s340 = sadd.s32 %s339, %s44
      %s341 = ssub.s32 %s337, %s340
      %p342 = scmp.eq.s32.totalorder %s341, 0
      %s344 = sadd.s32 %s343, 1
      %s345 = scalar_select %p342, %s343, %s344
      %p348 = pneg %p342
      %p349 = scmp.eq.s32.totalorder %s22, 7
      %p350 = por %p348, %p349
      %p351 = scmp.ne.s32.totalorder %s343, %s346
      %p352 = scmp.eq.s32.totalorder %s22, 0
      %p353 = por %p351, %p352
      %p354 = scmp.ne.s32.totalorder %s343, %s346
      %p355 = scmp.eq.s32.totalorder %s27, 7
      %p356 = por %p354, %p355
      %p357 = scmp.ne.s32.totalorder %s346, %s347
      %p358 = scmp.eq.s32.totalorder %s27, 0
      %p359 = por %p357, %p358
      %p360 = scmp.ne.s32.totalorder %s346, %s347
      %p361 = scmp.eq.s32.totalorder %s28, 7
      %p362 = por %p360, %p361
      %p364 = scmp.ne.s32.totalorder %s347, %s363
      %p365 = scmp.eq.s32.totalorder %s28, 0
      %p366 = por %p364, %p365
      %s367 = ssub.s32 %s29, %s48
      %s368 = ssub.s32 %s30, %s44
      %s369 = sor.u32 %s367, %s368
      %s370 = ssub.s32 %s31, %s40
      %s371 = sor.u32 %s369, %s370
      %p372 = scmp.eq.s32.totalorder %s371, 0
      %s374 = sadd.s32 %s373, 1
      %s375 = scalar_select %p372, %s373, %s374
      %p378 = pneg %p372
      %p379 = scmp.eq.s32.totalorder %s22, 7
      %p380 = por %p378, %p379
      %p381 = scmp.ne.s32.totalorder %s373, %s376
      %p382 = scmp.eq.s32.totalorder %s22, 0
      %p383 = por %p381, %p382
      %p384 = scmp.ne.s32.totalorder %s373, %s376
      %p385 = scmp.eq.s32.totalorder %s27, 7
      %p386 = por %p384, %p385
      %p387 = scmp.ne.s32.totalorder %s376, %s377
      %p388 = scmp.eq.s32.totalorder %s27, 0
      %p389 = por %p387, %p388
      %p390 = scmp.ne.s32.totalorder %s376, %s377
      %p391 = scmp.eq.s32.totalorder %s28, 7
      %p392 = por %p390, %p391
      %p394 = scmp.ne.s32.totalorder %s377, %s393
      %p395 = scmp.eq.s32.totalorder %s28, 0
      %p396 = por %p394, %p395
      %p397 = scmp.le.s32.totalorder 1, %s22
      %p398 = scmp.lt.s32.totalorder %s22, 9
      %p399 = pnand %p397, %p398
      %p400 = pneg %p399
      // Predicated region
      $region9: #{tpu_custom_call.1} parent=5 // pred_check
        _
      $region10: #{tpu_custom_call.1} parent=5 // pred_check_branch
        %402 = sbr.rel (%p399) target = $region12
      $region11: #{tpu_custom_call.1} parent=5 // pred_region
        %s403 = ssub.s32 %s22, 1
        // Predicated region
        $region13: #{tpu_custom_call.1} parent=11 // pred_check
          %p404 = pneg %p148
        $region14: #{tpu_custom_call.1} parent=11 // pred_check_branch
          %406 = sbr.rel (%p404) target = $region16
        $region15: #{tpu_custom_call.1} parent=11 // pred_region
          _
        $region16: #{tpu_custom_call.1} parent=11 // pred_fallthru
          _
        // Predicated region
        $region17: #{tpu_custom_call.1} parent=11 // pred_check
          %p407 = pneg %p169
        $region18: #{tpu_custom_call.1} parent=11 // pred_check_branch
          %409 = sbr.rel (%p407) target = $region20
        $region19: #{tpu_custom_call.1} parent=11 // pred_region
          _
        $region20: #{tpu_custom_call.1} parent=11 // pred_fallthru
          _
        // Predicated region
        $region21: #{tpu_custom_call.1} parent=11 // pred_check
          %p410 = pneg %p190
        $region22: #{tpu_custom_call.1} parent=11 // pred_check_branch
          %412 = sbr.rel (%p410) target = $region24
        $region23: #{tpu_custom_call.1} parent=11 // pred_region
          _
        $region24: #{tpu_custom_call.1} parent=11 // pred_fallthru
          _
        // Predicated region
        $region25: #{tpu_custom_call.1} parent=11 // pred_check
          %p413 = pneg %p211
        $region26: #{tpu_custom_call.1} parent=11 // pred_check_branch
          %415 = sbr.rel (%p413) target = $region28
        $region27: #{tpu_custom_call.1} parent=11 // pred_region
          _
        $region28: #{tpu_custom_call.1} parent=11 // pred_fallthru
          _
        // Predicated region
        $region29: #{tpu_custom_call.1} parent=11 // pred_check
          %p416 = pneg %p232
        $region30: #{tpu_custom_call.1} parent=11 // pred_check_branch
          %418 = sbr.rel (%p416) target = $region32
        $region31: #{tpu_custom_call.1} parent=11 // pred_region
          _
        $region32: #{tpu_custom_call.1} parent=11 // pred_fallthru
          _
        // Predicated region
        $region33: #{tpu_custom_call.1} parent=11 // pred_check
          %p419 = pneg %p253
        $region34: #{tpu_custom_call.1} parent=11 // pred_check_branch
          %421 = sbr.rel (%p419) target = $region36
        $region35: #{tpu_custom_call.1} parent=11 // pred_region
          _
        $region36: #{tpu_custom_call.1} parent=11 // pred_fallthru
          _
        // Predicated region
        $region37: #{tpu_custom_call.1} parent=11 // pred_check
          %p422 = pneg %p274
        $region38: #{tpu_custom_call.1} parent=11 // pred_check_branch
          %424 = sbr.rel (%p422) target = $region40
        $region39: #{tpu_custom_call.1} parent=11 // pred_region
          _
        $region40: #{tpu_custom_call.1} parent=11 // pred_fallthru
          _
        // Predicated region
        $region41: #{tpu_custom_call.1} parent=11 // pred_check
          %p425 = pneg %p295
        $region42: #{tpu_custom_call.1} parent=11 // pred_check_branch
          %427 = sbr.rel (%p425) target = $region44
        $region43: #{tpu_custom_call.1} parent=11 // pred_region
          _
        $region44: #{tpu_custom_call.1} parent=11 // pred_fallthru
          _
      $region12: #{tpu_custom_call.1} parent=5 // pred_fallthru
        _
      %p428 = scmp.lt.s32.totalorder %s22, 8
      // Predicated region
      $region45: #{tpu_custom_call.1} parent=5 // pred_check
        %p429 = pneg %p428
      $region46: #{tpu_custom_call.1} parent=5 // pred_check_branch
        %431 = sbr.rel (%p429) target = $region48
      $region47: #{tpu_custom_call.1} parent=5 // pred_region
        // Predicated region
        $region49: #{tpu_custom_call.1} parent=47 // pred_check
          %p432 = pneg %p69
        $region50: #{tpu_custom_call.1} parent=47 // pred_check_branch
          %434 = sbr.rel (%p432) target = $region52
        $region51: #{tpu_custom_call.1} parent=47 // pred_region
          %s435 = ssub.s32 1, %s30
          %s436 = smul.u32 %s31, %s435
          %s437 = sadd.s32 %s436, %s30
          %p438 = scmp.lt.s32.totalorder %s29, 1
          %s439 = scalar_select %p438, %s29, 1
          %p440 = scmp.lt.s32.totalorder %s437, 1
          %s441 = scalar_select %p440, %s437, 1
          %s442 = smul.addr %s439, 2
          %s443 = sadd.s32 %s441, %s442
          %s444 = smul.addr %s443, 4
          %s445 = scalar_lea.vmem %s0, %s444
          %s446 = ssub.s32 1, %s30
          %s447 = smul.u32 %s31, %s446
          %s448 = sadd.s32 %s447, %s30
        $region52: #{tpu_custom_call.1} parent=47 // pred_fallthru
          _
        // Predicated region
        $region53: #{tpu_custom_call.1} parent=47 // pred_check
          %p449 = pneg %p95
        $region54: #{tpu_custom_call.1} parent=47 // pred_check_branch
          %451 = sbr.rel (%p449) target = $region56
        $region55: #{tpu_custom_call.1} parent=47 // pred_region
          %p452 = scmp.lt.s32.totalorder %s29, 1
          %s453 = scalar_select %p452, %s29, 1
          %s454 = smul.addr %s453, 4
          %s455 = scalar_lea.vmem %s1, %s454
        $region56: #{tpu_custom_call.1} parent=47 // pred_fallthru
          _
        // Predicated region
        $region57: #{tpu_custom_call.1} parent=47 // pred_check
          %p456 = pneg %p121
        $region58: #{tpu_custom_call.1} parent=47 // pred_check_branch
          %458 = sbr.rel (%p456) target = $region60
        $region59: #{tpu_custom_call.1} parent=47 // pred_region
          %p459 = scmp.lt.s32.totalorder %s29, 1
          %s460 = scalar_select %p459, %s29, 1
          %s461 = smul.addr %s460, 4
          %s462 = scalar_lea.vmem %s2, %s461
        $region60: #{tpu_custom_call.1} parent=47 // pred_fallthru
          _
        // Predicated region
        $region61: #{tpu_custom_call.1} parent=47 // pred_check
          %p463 = pneg %p321
        $region62: #{tpu_custom_call.1} parent=47 // pred_check_branch
          %465 = sbr.rel (%p463) target = $region64
        $region63: #{tpu_custom_call.1} parent=47 // pred_region
          %s466 = ssub.s32 1, %s30
          %s467 = smul.u32 %s31, %s466
          %s468 = sadd.s32 %s467, %s30
          %p469 = scmp.lt.s32.totalorder %s468, 1
          %s470 = scalar_select %p469, %s468, 1
          %s471 = smul.addr %s470, 4
          %s472 = scalar_lea.vmem %s11, %s471
          %s473 = ssub.s32 1, %s30
          %s474 = smul.u32 %s31, %s473
          %s475 = sadd.s32 %s474, %s30
        $region64: #{tpu_custom_call.1} parent=47 // pred_fallthru
          _
        // Predicated region
        $region65: #{tpu_custom_call.1} parent=47 // pred_check
          %p476 = pneg %p353
        $region66: #{tpu_custom_call.1} parent=47 // pred_check_branch
          %478 = sbr.rel (%p476) target = $region68
        $region67: #{tpu_custom_call.1} parent=47 // pred_region
          %s479 = ssub.s32 1, %s30
          %s480 = smul.u32 %s31, %s479
          %s481 = sadd.s32 %s480, %s30
          %p482 = scmp.lt.s32.totalorder %s481, 1
          %s483 = scalar_select %p482, %s481, 1
          %s484 = smul.addr %s483, 4
          %s485 = scalar_lea.vmem %s12, %s484
          %s486 = ssub.s32 1, %s30
          %s487 = smul.u32 %s31, %s486
          %s488 = sadd.s32 %s487, %s30
        $region68: #{tpu_custom_call.1} parent=47 // pred_fallthru
          _
      $region48: #{tpu_custom_call.1} parent=5 // pred_fallthru
        _
      %p489 = scmp.le.s32.totalorder 1, %s22
      %p490 = scmp.lt.s32.totalorder %s22, 9
      %p491 = pnand %p489, %p490
      %p492 = pneg %p491
      // Predicated region
      $region69: #{tpu_custom_call.1} parent=5 // pred_check
        _
      $region70: #{tpu_custom_call.1} parent=5 // pred_check_branch
        %494 = sbr.rel (%p491) target = $region72
      $region71: #{tpu_custom_call.1} parent=5 // pred_region
        %s495 = ssub.s32 %s22, 1
        %s496 = ssub.s32 1, %s33
        %s497 = smul.u32 %s34, %s496
        %s498 = sadd.s32 %s497, %s33
        %p499 = scmp.lt.s32.totalorder %s32, 1
        %s500 = scalar_select %p499, %s32, 1
        %p501 = scmp.lt.s32.totalorder %s498, 1
        %s502 = scalar_select %p501, %s498, 1
        %s503 = smul.addr %s500, 2
        %s504 = sadd.s32 %s502, %s503
        %s505 = smul.addr %s504, 4
        %s506 = scalar_lea.vmem %s0, %s505
        %p507 = pneg %p75
        %p508 = pneg %p72
        %p509 = scmp.lt.s32.totalorder %s32, 1
        %s510 = scalar_select %p509, %s32, 1
        %s511 = smul.addr %s510, 4
        %s512 = scalar_lea.vmem %s1, %s511
        %p513 = pneg %p101
        %p514 = pneg %p98
        %p515 = scmp.lt.s32.totalorder %s32, 1
        %s516 = scalar_select %p515, %s32, 1
        %s517 = smul.addr %s516, 4
        %s518 = scalar_lea.vmem %s2, %s517
        %p519 = pneg %p127
        %p520 = pneg %p124
        %p521 = pneg %p148
        %p522 = pneg %p145
        %p523 = pneg %p169
        %p524 = pneg %p166
        %p525 = pneg %p190
        %p526 = pneg %p187
        %p527 = pneg %p211
        %p528 = pneg %p208
        %p529 = pneg %p232
        %p530 = pneg %p229
        %p531 = pneg %p253
        %p532 = pneg %p250
        %p533 = pneg %p274
        %p534 = pneg %p271
        %p535 = pneg %p295
        %p536 = pneg %p292
        %s537 = ssub.s32 1, %s33
        %s538 = smul.u32 %s34, %s537
        %s539 = sadd.s32 %s538, %s33
        %p540 = scmp.lt.s32.totalorder %s539, 1
        %s541 = scalar_select %p540, %s539, 1
        %s542 = smul.addr %s541, 4
        %s543 = scalar_lea.vmem %s11, %s542
        %p544 = pneg %p327
        %p545 = pneg %p324
        %s546 = ssub.s32 1, %s33
        %s547 = smul.u32 %s34, %s546
        %s548 = sadd.s32 %s547, %s33
        %p549 = scmp.lt.s32.totalorder %s548, 1
        %s550 = scalar_select %p549, %s548, 1
        %s551 = smul.addr %s550, 4
        %s552 = scalar_lea.vmem %s12, %s551
        %p553 = pneg %p359
        %p554 = pneg %p356
        %p555 = pneg %p389
        %p556 = pneg %p386
        %s557 = sand.u32 %s376, 1
        %s558 = scalar_lea.sflag [#allocation6], %s557
        %s559 = sand.u32 %s376, 1
        %s560 = smul.addr %s559, 4
        %s561 = scalar_lea.vmem [#allocation5], %s560
        %s562 = ssub.s32 1, %s33
        %s563 = smul.u32 %s34, %s562
        %s564 = sadd.s32 %s563, %s33
        %p565 = scmp.lt.s32.totalorder %s32, 1
        %s566 = scalar_select %p565, %s32, 1
        %p567 = scmp.lt.s32.totalorder %s564, 1
        %s568 = scalar_select %p567, %s564, 1
        %s569 = smul.addr %s566, 2
        %s570 = sadd.s32 %s568, %s569
        %s571 = smul.addr %s570, 4
        %s572 = scalar_lea.vmem %s0, %s571
        %s573 = ssub.s32 1, %s33
        %s574 = smul.u32 %s34, %s573
        %s575 = sadd.s32 %s574, %s33
        %p576 = scmp.lt.s32.totalorder %s32, 1
        %s577 = scalar_select %p576, %s32, 1
        %s578 = smul.addr %s577, 4
        %s579 = scalar_lea.vmem %s1, %s578
        %p580 = scmp.lt.s32.totalorder %s32, 1
        %s581 = scalar_select %p580, %s32, 1
        %s582 = smul.addr %s581, 4
        %s583 = scalar_lea.vmem %s2, %s582
        %s584 = ssub.s32 1, %s33
        %s585 = smul.u32 %s34, %s584
        %s586 = sadd.s32 %s585, %s33
        %p587 = scmp.lt.s32.totalorder %s586, 1
        %s588 = scalar_select %p587, %s586, 1
        %s589 = smul.addr %s588, 4
        %s590 = scalar_lea.vmem %s11, %s589
        %s591 = ssub.s32 1, %s33
        %s592 = smul.u32 %s34, %s591
        %s593 = sadd.s32 %s592, %s33
        %s594 = ssub.s32 1, %s33
        %s595 = smul.u32 %s34, %s594
        %s596 = sadd.s32 %s595, %s33
        %p597 = scmp.lt.s32.totalorder %s596, 1
        %s598 = scalar_select %p597, %s596, 1
        %s599 = smul.addr %s598, 4
        %s600 = scalar_lea.vmem %s12, %s599
        %s601 = ssub.s32 1, %s33
        %s602 = smul.u32 %s34, %s601
        %s603 = sadd.s32 %s602, %s33
        %p604 = scmp.eq.s32.totalorder %s33, 0
        // Predicated region
        $region73: #{tpu_custom_call.1} parent=71 // pred_check
          %p605 = pneg %p604
        $region74: #{tpu_custom_call.1} parent=71 // pred_check_branch
          %607 = sbr.rel (%p605) target = $region76
        $region75: #{tpu_custom_call.1} parent=71 // pred_region
          %p608 = scmp.eq.s32.totalorder %s34, 0
          // Predicated region
          $region77: #{tpu_custom_call.1} parent=75 // pred_check
            %p609 = pneg %p608
          $region78: #{tpu_custom_call.1} parent=75 // pred_check_branch
            %611 = sbr.rel (%p609) target = $region80
          $region79: #{tpu_custom_call.1} parent=75 // pred_region
            %vm612 = vcmask 27648
            %613 = vst.msk [vmem:[#allocation2] sm:$0xf] %vm612, 0.0
          $region80: #{tpu_custom_call.1} parent=75 // pred_fallthru
            _
          %v614 = vld [vmem:[%s572] sm:$0xf]
          %v615 = vld [vmem:[%s9] sm:$0xf]
          %617 = vset.pattern.permute.xlu0 0
          %618 = vperm.xlu0 %617, %v615
          %v619 = vpop.permute.xlu0 %618
          %v621 = vadd.f32 %v614, %v619
          %v622 = vxor.u32 %v621, 2147483648
          %v623 = vmul.f32 %v622, 1.442695
          %v624 = vpow.pop %v623
          %v625 = vadd.f32 %v624, 1.0
          %v626 = vrcp.pop %v625
          %v627 = vmul.f32 1.0, %v626
          %v628 = vmul.f32 %v621, %v627
          %v629 = vld [vmem:[%s10] sm:$0xf]
          %631 = vset.pattern.permute.xlu0 0
          %632 = vperm.xlu0 %631, %v629
          %v633 = vpop.permute.xlu0 %632
          %v635 = vadd.f32 %v628, %v633
          %v636 = vld [vmem:[%s3] sm:$0xf]
          %v637 = vld [vmem:[%s6] sm:$0xf]
          %639 = vset.pattern.permute.xlu0 0
          %640 = vperm.xlu0 %639, %v637
          %v641 = vpop.permute.xlu0 %640
          %vm643 = vcmask 31744
          %v645 = vsel %vm643, %v636, 0
          %vm647 = vcmask 1043456
          %v649 = vsel %vm647, %v635, 0
          %651 = vmatprep.subr.mxu0 0.0
          %652 = vmatpush1.msra.mxu0 0.0
          %653 = vmatprep.subr.mxu0 0.0
          %654 = vmatpush1.msra.mxu0 0.0
          %655 = vmatprep.subr.mxu0 0.0
          %656 = vmatpush1.msra.mxu0 0.0
          %657 = vmatprep.subr.mxu0 0.0
          %658 = vmatpush1.msra.mxu0 0.0
          %659 = vmatprep.subr.mxu0 0.0
          %660 = vmatpush1.msra.mxu0 0.0
          %661 = vmatprep.subr.mxu0 0.0
          %662 = vmatpush1.msra.mxu0 0.0
          %663 = vmatprep.subr.mxu0 0.0
          %664 = vmatpush1.msra.mxu0 0.0
          %665 = vmatprep.subr.mxu0 0.0
          %666 = vmatpush1.msra.mxu0 0.0
          %667 = vmatprep.subr.mxu0 0.0
          %668 = vmatpush1.msra.mxu0 0.0
          %669 = vmatprep.subr.mxu0 0.0
          %670 = vmatpush1.msra.mxu0 0.0
          %671 = vmatprep.subr.mxu0 0.0
          %672 = vmatpush1.msra.mxu0 0.0
          %673 = vmatprep.subr.mxu0 0.0
          %674 = vmatpush1.msra.mxu0 0.0
          %675 = vmatprep.subr.mxu0 0.0
          %676 = vmatpush1.msra.mxu0 0.0
          %677 = vmatprep.subr.mxu0 0.0
          %678 = vmatpush1.msra.mxu0 0.0
          %679 = vmatprep.subr.mxu0 0.0
          %680 = vmatpush1.msra.mxu0 0.0
          %681 = vmatprep.subr.mxu0 0.0
          %682 = vmatpush1.msra.mxu0 %v649
          %683 = vmatprep.subr.mxu0 0.0
          %684 = vmatpush2.msra.mxu0 0.0
          %685 = vmatprep.subr.mxu0 0.0
          %686 = vmatpush2.msra.mxu0 0.0
          %687 = vmatprep.subr.mxu0 0.0
          %688 = vmatpush2.msra.mxu0 0.0
          %689 = vmatprep.subr.mxu0 0.0
          %690 = vmatpush2.msra.mxu0 0.0
          %691 = vmatprep.subr.mxu0 0.0
          %692 = vmatpush2.msra.mxu0 0.0
          %693 = vmatprep.subr.mxu0 0.0
          %694 = vmatpush2.msra.mxu0 0.0
          %695 = vmatprep.subr.mxu0 0.0
          %696 = vmatpush2.msra.mxu0 0.0
          %697 = vmatprep.subr.mxu0 0.0
          %698 = vmatpush2.msra.mxu0 0.0
          %699 = vmatprep.subr.mxu0 0.0
          %700 = vmatpush2.msra.mxu0 0.0
          %701 = vmatprep.subr.mxu0 0.0
          %702 = vmatpush2.msra.mxu0 0.0
          %703 = vmatprep.subr.mxu0 0.0
          %704 = vmatpush2.msra.mxu0 0.0
          %705 = vmatprep.subr.mxu0 0.0
          %706 = vmatpush2.msra.mxu0 0.0
          %707 = vmatprep.subr.mxu0 0.0
          %708 = vmatpush2.msra.mxu0 0.0
          %709 = vmatprep.subr.mxu0 0.0
          %710 = vmatpush2.msra.mxu0 0.0
          %711 = vmatprep.subr.mxu0 0.0
          %712 = vmatpush2.msra.mxu0 0.0
          %713 = vmatprep.subr.mxu0 0.0
          %714 = vmatpush2.msra.mxu0 0.0
          %715 = vmatprep.mubr.f32.mxu0 0.0
          %716 = vmatmul.mubr.f32.gmra.mxu0 %v645
          %v717 = vpop.f32.mrf.mxu0
          %v718 = vadd.f32 %v641, %v717
          %v719 = vpop.f32.mrf.mxu0
          %720 = vdwg.mxu0
          %v721 = vld [vmem:[%s590] sm:$0xf]
          %v722 = vadd.f32 %v718, %v721
          %v723 = vld [vmem:[%s579] sm:$0xf]
          %725 = vset.pattern.permute.xlu0 0
          %726 = vperm.xlu0 %725, %v723
          %v727 = vpop.permute.xlu0 %726
          %v729 = vmul.f32 %v722, %v727
          %v730 = vld [vmem:[%s583] sm:$0xf]
          %732 = vset.pattern.permute.xlu0 0
          %733 = vperm.xlu0 %732, %v730
          %v734 = vpop.permute.xlu0 %733
          %v736 = vadd.f32 %v729, %v734
          %v737 = vld [vmem:[%s4] sm:$0xf]
          %v738 = vld [vmem:[%s7] sm:$0xf]
          %740 = vset.pattern.permute.xlu0 0
          %741 = vperm.xlu0 %740, %v738
          %v742 = vpop.permute.xlu0 %741
          %v745 = vsel %vm643, %v737, 0
          %747 = vmatprep.subr.mxu0 0.0
          %748 = vmatpush1.msra.mxu0 0.0
          %749 = vmatprep.subr.mxu0 0.0
          %750 = vmatpush1.msra.mxu0 0.0
          %751 = vmatprep.subr.mxu0 0.0
          %752 = vmatpush1.msra.mxu0 0.0
          %753 = vmatprep.subr.mxu0 0.0
          %754 = vmatpush1.msra.mxu0 0.0
          %755 = vmatprep.subr.mxu0 0.0
          %756 = vmatpush1.msra.mxu0 0.0
          %757 = vmatprep.subr.mxu0 0.0
          %758 = vmatpush1.msra.mxu0 0.0
          %759 = vmatprep.subr.mxu0 0.0
          %760 = vmatpush1.msra.mxu0 0.0
          %761 = vmatprep.subr.mxu0 0.0
          %762 = vmatpush1.msra.mxu0 0.0
          %763 = vmatprep.subr.mxu0 0.0
          %764 = vmatpush1.msra.mxu0 0.0
          %765 = vmatprep.subr.mxu0 0.0
          %766 = vmatpush1.msra.mxu0 0.0
          %767 = vmatprep.subr.mxu0 0.0
          %768 = vmatpush1.msra.mxu0 0.0
          %769 = vmatprep.subr.mxu0 0.0
          %770 = vmatpush1.msra.mxu0 0.0
          %771 = vmatprep.subr.mxu0 0.0
          %772 = vmatpush1.msra.mxu0 0.0
          %773 = vmatprep.subr.mxu0 0.0
          %774 = vmatpush1.msra.mxu0 0.0
          %775 = vmatprep.subr.mxu0 0.0
          %776 = vmatpush1.msra.mxu0 0.0
          %777 = vmatprep.subr.mxu0 0.0
          %778 = vmatpush1.msra.mxu0 %v649
          %779 = vmatprep.subr.mxu0 0.0
          %780 = vmatpush2.msra.mxu0 0.0
          %781 = vmatprep.subr.mxu0 0.0
          %782 = vmatpush2.msra.mxu0 0.0
          %783 = vmatprep.subr.mxu0 0.0
          %784 = vmatpush2.msra.mxu0 0.0
          %785 = vmatprep.subr.mxu0 0.0
          %786 = vmatpush2.msra.mxu0 0.0
          %787 = vmatprep.subr.mxu0 0.0
          %788 = vmatpush2.msra.mxu0 0.0
          %789 = vmatprep.subr.mxu0 0.0
          %790 = vmatpush2.msra.mxu0 0.0
          %791 = vmatprep.subr.mxu0 0.0
          %792 = vmatpush2.msra.mxu0 0.0
          %793 = vmatprep.subr.mxu0 0.0
          %794 = vmatpush2.msra.mxu0 0.0
          %795 = vmatprep.subr.mxu0 0.0
          %796 = vmatpush2.msra.mxu0 0.0
          %797 = vmatprep.subr.mxu0 0.0
          %798 = vmatpush2.msra.mxu0 0.0
          %799 = vmatprep.subr.mxu0 0.0
          %800 = vmatpush2.msra.mxu0 0.0
          %801 = vmatprep.subr.mxu0 0.0
          %802 = vmatpush2.msra.mxu0 0.0
          %803 = vmatprep.subr.mxu0 0.0
          %804 = vmatpush2.msra.mxu0 0.0
          %805 = vmatprep.subr.mxu0 0.0
          %806 = vmatpush2.msra.mxu0 0.0
          %807 = vmatprep.subr.mxu0 0.0
          %808 = vmatpush2.msra.mxu0 0.0
          %809 = vmatprep.subr.mxu0 0.0
          %810 = vmatpush2.msra.mxu0 0.0
          %811 = vmatprep.mubr.f32.mxu0 0.0
          %812 = vmatmul.mubr.f32.gmra.mxu0 %v745
          %v813 = vpop.f32.mrf.mxu0
          %v814 = vadd.f32 %v742, %v813
          %v815 = vpop.f32.mrf.mxu0
          %816 = vdwg.mxu0
          %v817 = vld [vmem:[%s600] sm:$0xf]
          %v818 = vadd.f32 %v814, %v817
          %v819 = vld [vmem:[#allocation2] sm:$0xf]
          %820 = vmatprep.subr.mxu0 0.0
          %821 = vmatpush1.xpose.msra.mxu0 0.0
          %822 = vmatprep.subr.mxu0 0.0
          %823 = vmatpush1.xpose.msra.mxu0 0.0
          %824 = vmatprep.subr.mxu0 0.0
          %825 = vmatpush1.xpose.msra.mxu0 0.0
          %826 = vmatprep.subr.mxu0 0.0
          %827 = vmatpush1.xpose.msra.mxu0 0.0
          %828 = vmatprep.subr.mxu0 0.0
          %829 = vmatpush1.xpose.msra.mxu0 0.0
          %830 = vmatprep.subr.mxu0 0.0
          %831 = vmatpush1.xpose.msra.mxu0 0.0
          %832 = vmatprep.subr.mxu0 0.0
          %833 = vmatpush1.xpose.msra.mxu0 0.0
          %834 = vmatprep.subr.mxu0 0.0
          %835 = vmatpush1.xpose.msra.mxu0 0.0
          %836 = vmatprep.subr.mxu0 0.0
          %837 = vmatpush1.xpose.msra.mxu0 0.0
          %838 = vmatprep.subr.mxu0 0.0
          %839 = vmatpush1.xpose.msra.mxu0 0.0
          %840 = vmatprep.subr.mxu0 0.0
          %841 = vmatpush1.xpose.msra.mxu0 0.0
          %842 = vmatprep.subr.mxu0 0.0
          %843 = vmatpush1.xpose.msra.mxu0 0.0
          %844 = vmatprep.subr.mxu0 0.0
          %845 = vmatpush1.xpose.msra.mxu0 0.0
          %846 = vmatprep.subr.mxu0 0.0
          %847 = vmatpush1.xpose.msra.mxu0 0.0
          %848 = vmatprep.subr.mxu0 0.0
          %849 = vmatpush1.xpose.msra.mxu0 0.0
          %850 = vmatprep.subr.mxu0 0.0
          %851 = vmatpush1.xpose.msra.mxu0 %v818
          %852 = vmatprep.subr.mxu0 0.0
          %853 = vmatpush2.xpose.msra.mxu0 0.0
          %854 = vmatprep.subr.mxu0 0.0
          %855 = vmatpush2.xpose.msra.mxu0 0.0
          %856 = vmatprep.subr.mxu0 0.0
          %857 = vmatpush2.xpose.msra.mxu0 0.0
          %858 = vmatprep.subr.mxu0 0.0
          %859 = vmatpush2.xpose.msra.mxu0 0.0
          %860 = vmatprep.subr.mxu0 0.0
          %861 = vmatpush2.xpose.msra.mxu0 0.0
          %862 = vmatprep.subr.mxu0 0.0
          %863 = vmatpush2.xpose.msra.mxu0 0.0
          %864 = vmatprep.subr.mxu0 0.0
          %865 = vmatpush2.xpose.msra.mxu0 0.0
          %866 = vmatprep.subr.mxu0 0.0
          %867 = vmatpush2.xpose.msra.mxu0 0.0
          %868 = vmatprep.subr.mxu0 0.0
          %869 = vmatpush2.xpose.msra.mxu0 0.0
          %870 = vmatprep.subr.mxu0 0.0
          %871 = vmatpush2.xpose.msra.mxu0 0.0
          %872 = vmatprep.subr.mxu0 0.0
          %873 = vmatpush2.xpose.msra.mxu0 0.0
          %874 = vmatprep.subr.mxu0 0.0
          %875 = vmatpush2.xpose.msra.mxu0 0.0
          %876 = vmatprep.subr.mxu0 0.0
          %877 = vmatpush2.xpose.msra.mxu0 0.0
          %878 = vmatprep.subr.mxu0 0.0
          %879 = vmatpush2.xpose.msra.mxu0 0.0
          %880 = vmatprep.subr.mxu0 0.0
          %881 = vmatpush2.xpose.msra.mxu0 0.0
          %882 = vmatprep.subr.mxu0 0.0
          %883 = vmatpush2.xpose.msra.mxu0 0.0
          %884 = vmatprep.mubr.f32.mxu0 0.0
          %885 = vmatmul.mubr.f32.gmra.mxu0 %v736
          %v886 = vpop.f32.mrf.mxu0
          %v887 = vadd.f32 0.0, %v886
          %v888 = vpop.f32.mrf.mxu0
          %889 = vdwg.mxu0
          %v890 = vadd.f32 %v819, %v887
          %vm891 = vcmask 27648
          %892 = vst.msk [vmem:[#allocation2] sm:$0xf] %vm891, %v890
          %v893 = vld [vmem:[%s5] sm:$0xf]
          %v894 = vld [vmem:[%s8] sm:$0xf]
          %896 = vset.pattern.permute.xlu0 0
          %897 = vperm.xlu0 %896, %v894
          %v898 = vpop.permute.xlu0 %897
          %v901 = vsel %vm643, %v893, 0
          %903 = vmatprep.subr.mxu0 0.0
          %904 = vmatpush1.msra.mxu0 0.0
          %905 = vmatprep.subr.mxu0 0.0
          %906 = vmatpush1.msra.mxu0 0.0
          %907 = vmatprep.subr.mxu0 0.0
          %908 = vmatpush1.msra.mxu0 0.0
          %909 = vmatprep.subr.mxu0 0.0
          %910 = vmatpush1.msra.mxu0 0.0
          %911 = vmatprep.subr.mxu0 0.0
          %912 = vmatpush1.msra.mxu0 0.0
          %913 = vmatprep.subr.mxu0 0.0
          %914 = vmatpush1.msra.mxu0 0.0
          %915 = vmatprep.subr.mxu0 0.0
          %916 = vmatpush1.msra.mxu0 0.0
          %917 = vmatprep.subr.mxu0 0.0
          %918 = vmatpush1.msra.mxu0 0.0
          %919 = vmatprep.subr.mxu0 0.0
          %920 = vmatpush1.msra.mxu0 0.0
          %921 = vmatprep.subr.mxu0 0.0
          %922 = vmatpush1.msra.mxu0 0.0
          %923 = vmatprep.subr.mxu0 0.0
          %924 = vmatpush1.msra.mxu0 0.0
          %925 = vmatprep.subr.mxu0 0.0
          %926 = vmatpush1.msra.mxu0 0.0
          %927 = vmatprep.subr.mxu0 0.0
          %928 = vmatpush1.msra.mxu0 0.0
          %929 = vmatprep.subr.mxu0 0.0
          %930 = vmatpush1.msra.mxu0 0.0
          %931 = vmatprep.subr.mxu0 0.0
          %932 = vmatpush1.msra.mxu0 0.0
          %933 = vmatprep.subr.mxu0 0.0
          %934 = vmatpush1.msra.mxu0 %v649
          %935 = vmatprep.subr.mxu0 0.0
          %936 = vmatpush2.msra.mxu0 0.0
          %937 = vmatprep.subr.mxu0 0.0
          %938 = vmatpush2.msra.mxu0 0.0
          %939 = vmatprep.subr.mxu0 0.0
          %940 = vmatpush2.msra.mxu0 0.0
          %941 = vmatprep.subr.mxu0 0.0
          %942 = vmatpush2.msra.mxu0 0.0
          %943 = vmatprep.subr.mxu0 0.0
          %944 = vmatpush2.msra.mxu0 0.0
          %945 = vmatprep.subr.mxu0 0.0
          %946 = vmatpush2.msra.mxu0 0.0
          %947 = vmatprep.subr.mxu0 0.0
          %948 = vmatpush2.msra.mxu0 0.0
          %949 = vmatprep.subr.mxu0 0.0
          %950 = vmatpush2.msra.mxu0 0.0
          %951 = vmatprep.subr.mxu0 0.0
          %952 = vmatpush2.msra.mxu0 0.0
          %953 = vmatprep.subr.mxu0 0.0
          %954 = vmatpush2.msra.mxu0 0.0
          %955 = vmatprep.subr.mxu0 0.0
          %956 = vmatpush2.msra.mxu0 0.0
          %957 = vmatprep.subr.mxu0 0.0
          %958 = vmatpush2.msra.mxu0 0.0
          %959 = vmatprep.subr.mxu0 0.0
          %960 = vmatpush2.msra.mxu0 0.0
          %961 = vmatprep.subr.mxu0 0.0
          %962 = vmatpush2.msra.mxu0 0.0
          %963 = vmatprep.subr.mxu0 0.0
          %964 = vmatpush2.msra.mxu0 0.0
          %965 = vmatprep.subr.mxu0 0.0
          %966 = vmatpush2.msra.mxu0 0.0
          %967 = vmatprep.mubr.f32.mxu0 0.0
          %968 = vmatmul.mubr.f32.gmra.mxu0 %v901
          %v969 = vpop.f32.mrf.mxu0
          %v970 = vadd.f32 %v898, %v969
          %v971 = vpop.f32.mrf.mxu0
          %972 = vdwg.mxu0
          %s973 = smul.u32 %s34, 4
          %s974 = scalar_lea.vmem [#allocation4], %s973
          %975 = vst [vmem:[%s974] sm:$0xf] %v970
          %976 = vst [vmem:[%s561] sm:$0xf] %v628
          %p977 = scmp.eq.s32.totalorder %s34, 1
          // Predicated region
          $region81: #{tpu_custom_call.1} parent=75 // pred_check
            %p978 = pneg %p977
          $region82: #{tpu_custom_call.1} parent=75 // pred_check_branch
            %980 = sbr.rel (%p978) target = $region84
          $region83: #{tpu_custom_call.1} parent=75 // pred_region
            %v981 = vld [vmem:[#allocation2] sm:$0xf]
            %v982 = vmul.f32 %v981, 0.5
            %v983 = vsel %vm891, %v982, -inf
            %984 = vmax.xlane.f32.xlu0 %v983
            %v985 = vpop.xlane.xlu0 %984
            %v986 = vsub.f32 %v982, %v985
            %v987 = vmul.f32 %v986, 1.442695
            %v988 = vpow.pop %v987
            %v989 = vsel %vm891, %v988, 0.0
            %990 = vadd.xlane.f32.xlu0 %v989
            %v991 = vpop.xlane.xlu0 %990
            %v992 = vrcp.pop %v991
            %v993 = vmul.f32 1.0, %v992
            %v994 = vmul.f32 %v988, %v993
            %995 = vst.msk [vmem:[#allocation3] sm:$0xf] %vm891, %v994
          $region84: #{tpu_custom_call.1} parent=75 // pred_fallthru
            _
        $region76: #{tpu_custom_call.1} parent=71 // pred_fallthru
          _
        %p996 = scmp.eq.s32.totalorder %s33, 1
        // Predicated region
        $region85: #{tpu_custom_call.1} parent=71 // pred_check
          %p997 = pneg %p996
        $region86: #{tpu_custom_call.1} parent=71 // pred_check_branch
          %999 = sbr.rel (%p997) target = $region88
        $region87: #{tpu_custom_call.1} parent=71 // pred_region
          %s1000 = smul.u32 %s34, 4
          %s1001 = scalar_lea.vmem [#allocation4], %s1000
          %v1002 = vld [vmem:[%s1001] sm:$0xf]
          %v1003 = vld [vmem:[#allocation3] sm:$0xf]
          %vm1004 = vcmask 31744
          %v1006 = vsel %vm1004, %v1003, 0
          %vm1008 = vcmask 1043456
          %v1010 = vsel %vm1008, %v1002, 0
          %1012 = vmatprep.subr.mxu0 0.0
          %1013 = vmatpush1.msra.mxu0 0.0
          %1014 = vmatprep.subr.mxu0 0.0
          %1015 = vmatpush1.msra.mxu0 0.0
          %1016 = vmatprep.subr.mxu0 0.0
          %1017 = vmatpush1.msra.mxu0 0.0
          %1018 = vmatprep.subr.mxu0 0.0
          %1019 = vmatpush1.msra.mxu0 0.0
          %1020 = vmatprep.subr.mxu0 0.0
          %1021 = vmatpush1.msra.mxu0 0.0
          %1022 = vmatprep.subr.mxu0 0.0
          %1023 = vmatpush1.msra.mxu0 0.0
          %1024 = vmatprep.subr.mxu0 0.0
          %1025 = vmatpush1.msra.mxu0 0.0
          %1026 = vmatprep.subr.mxu0 0.0
          %1027 = vmatpush1.msra.mxu0 0.0
          %1028 = vmatprep.subr.mxu0 0.0
          %1029 = vmatpush1.msra.mxu0 0.0
          %1030 = vmatprep.subr.mxu0 0.0
          %1031 = vmatpush1.msra.mxu0 0.0
          %1032 = vmatprep.subr.mxu0 0.0
          %1033 = vmatpush1.msra.mxu0 0.0
          %1034 = vmatprep.subr.mxu0 0.0
          %1035 = vmatpush1.msra.mxu0 0.0
          %1036 = vmatprep.subr.mxu0 0.0
          %1037 = vmatpush1.msra.mxu0 0.0
          %1038 = vmatprep.subr.mxu0 0.0
          %1039 = vmatpush1.msra.mxu0 0.0
          %1040 = vmatprep.subr.mxu0 0.0
          %1041 = vmatpush1.msra.mxu0 0.0
          %1042 = vmatprep.subr.mxu0 0.0
          %1043 = vmatpush1.msra.mxu0 %v1010
          %1044 = vmatprep.subr.mxu0 0.0
          %1045 = vmatpush2.msra.mxu0 0.0
          %1046 = vmatprep.subr.mxu0 0.0
          %1047 = vmatpush2.msra.mxu0 0.0
          %1048 = vmatprep.subr.mxu0 0.0
          %1049 = vmatpush2.msra.mxu0 0.0
          %1050 = vmatprep.subr.mxu0 0.0
          %1051 = vmatpush2.msra.mxu0 0.0
          %1052 = vmatprep.subr.mxu0 0.0
          %1053 = vmatpush2.msra.mxu0 0.0
          %1054 = vmatprep.subr.mxu0 0.0
          %1055 = vmatpush2.msra.mxu0 0.0
          %1056 = vmatprep.subr.mxu0 0.0
          %1057 = vmatpush2.msra.mxu0 0.0
          %1058 = vmatprep.subr.mxu0 0.0
          %1059 = vmatpush2.msra.mxu0 0.0
          %1060 = vmatprep.subr.mxu0 0.0
          %1061 = vmatpush2.msra.mxu0 0.0
          %1062 = vmatprep.subr.mxu0 0.0
          %1063 = vmatpush2.msra.mxu0 0.0
          %1064 = vmatprep.subr.mxu0 0.0
          %1065 = vmatpush2.msra.mxu0 0.0
          %1066 = vmatprep.subr.mxu0 0.0
          %1067 = vmatpush2.msra.mxu0 0.0
          %1068 = vmatprep.subr.mxu0 0.0
          %1069 = vmatpush2.msra.mxu0 0.0
          %1070 = vmatprep.subr.mxu0 0.0
          %1071 = vmatpush2.msra.mxu0 0.0
          %1072 = vmatprep.subr.mxu0 0.0
          %1073 = vmatpush2.msra.mxu0 0.0
          %1074 = vmatprep.subr.mxu0 0.0
          %1075 = vmatpush2.msra.mxu0 0.0
          %1076 = vmatprep.mubr.f32.mxu0 0.0
          %1077 = vmatmul.mubr.f32.gmra.mxu0 %v1006
          %v1078 = vpop.f32.mrf.mxu0
          %v1079 = vadd.f32 0.0, %v1078
          %v1080 = vpop.f32.mrf.mxu0
          %1081 = vdwg.mxu0
          %1082 = vst [vmem:[%s561] sm:$0xf] %v1079
        $region88: #{tpu_custom_call.1} parent=71 // pred_fallthru
          _
        %s1083 = sand.u32 %s376, 1
        %s1084 = scalar_lea.sflag [#allocation6], %s1083
        %s1085 = sand.u32 %s376, 1
        %s1086 = smul.addr %s1085, 4
        %s1087 = scalar_lea.vmem [#allocation5], %s1086
        // Predicated region
        $region89: #{tpu_custom_call.1} parent=71 // pred_check
          %p1088 = pneg %p386
        $region90: #{tpu_custom_call.1} parent=71 // pred_check_branch
          %1090 = sbr.rel (%p1088) target = $region92
        $region91: #{tpu_custom_call.1} parent=71 // pred_region
          %s1092 = ssub.s32 64, 64
          %1093 = vsyncadd %s1084, %s1092
          %s1094 = smul.addr %s33, 2
          %s1095 = sadd.s32 %s34, %s1094
          %s1096 = smul.addr %s32, 4
          %s1097 = sadd.s32 %s1095, %s1096
          %s1098 = smul.addr %s1097, 64
          %s1099 = scalar_lea.hbm %s13, %s1098
          %s1101 = sshll.u32 %s1087, 4
          %s1102 = int_to_ptr.vmem [resolvable:$true] %s1101
          %1104 = dma.vmem_to_hbm [thread:$0]  %s1102, 64, %s1099, %s1084
        $region92: #{tpu_custom_call.1} parent=71 // pred_fallthru
          _
      $region72: #{tpu_custom_call.1} parent=5 // pred_fallthru
        _
      %p1105 = scmp.le.s32.totalorder 2, %s22
      // Predicated region
      $region93: #{tpu_custom_call.1} parent=5 // pred_check
        %p1106 = pneg %p1105
      $region94: #{tpu_custom_call.1} parent=5 // pred_check_branch
        %1108 = sbr.rel (%p1106) target = $region96
      $region95: #{tpu_custom_call.1} parent=5 // pred_region
        %s1109 = ssub.s32 %s22, 2
        // Predicated region
        $region97: #{tpu_custom_call.1} parent=95 // pred_check
          %p1110 = pneg %p392
        $region98: #{tpu_custom_call.1} parent=95 // pred_check_branch
          %1112 = sbr.rel (%p1110) target = $region100
        $region99: #{tpu_custom_call.1} parent=95 // pred_region
          %s1113 = sand.u32 %s377, 1
          %s1114 = scalar_lea.sflag [#allocation6], %s1113
          %s1115 = sand.u32 %s377, 1
          %s1116 = smul.addr %s1115, 4
          %s1117 = scalar_lea.vmem [#allocation5], %s1116
          %1118 = dma.done %s1114, 64
        $region100: #{tpu_custom_call.1} parent=95 // pred_fallthru
          _
      $region96: #{tpu_custom_call.1} parent=5 // pred_fallthru
        _
    $region6: #{tpu_custom_call.1} parent=1 // loop_footer
      %s26 = sadd.s32 1, %s22
    $region7: #{tpu_custom_call.1} parent=1 // loop_footer_branch
      %21 = sbr.rel target = $region3
    $region8: #{tpu_custom_call.1} parent=1 // loop_exit
      _
    %1119 = vsyncpa [#allocation6], 1
    %s1120 = scalar_lea.sflag [#allocation6], 1
    %1121 = vsyncpa %s1120, 1

</llo_original>
